<compile_context>
chip_gen: v7x
topology: tpu7x:2x2x1
jax: 0.10.0
libtpu: 0.0.40
codegen_flags: <defaults>
</compile_context>

<pallas_src>
import math
import functools

import jax
import jax.numpy as jnp
from jax import lax
from jax.experimental import pallas as pl
from jax.experimental.pallas import tpu as pltpu

NUM_GROUPS = 32       # nn.GroupNorm(32, channels)
GN_EPS = 1e-5         # PyTorch GroupNorm default eps


def _attention_block_kernel(x_ref, p_ref, gamma_ref, beta_ref,
                            wqkv_ref, bqkv_ref, wp_ref, bp_ref,
                            out_ref, qkv_ref, att_ref, *, num_heads):
    """One batch element per grid step.

    x_ref:     (1, C, T)   f32  input slab
    p_ref:     (C, C)      f32  group-averaging matrix  P[c,c'] = 1/(cs*T) if same group
    gamma_ref: (C, 1)      f32  GroupNorm weight
    beta_ref:  (C, 1)      f32  GroupNorm bias
    wqkv_ref:  (3C, C)     bf16 qkv 1x1-conv weight (q rows pre-scaled by 1/sqrt(ch))
    bqkv_ref:  (3C, 1)     f32  qkv bias (q rows pre-scaled)
    wp_ref:    (C, C)      bf16 proj_out 1x1-conv weight
    bp_ref:    (C, 1)      f32  proj_out bias
    out_ref:   (1, C, T)   f32  output slab
    qkv_ref:   (H, 3ch, T) bf16 VMEM scratch: staged qkv, one slab per head
    att_ref:   (H, ch, T)  bf16 VMEM scratch: per-head attention outputs
    """
    x = x_ref[0]                      # (C, T) float32
    C, T = x.shape
    ch = C // num_heads

    # ---- GroupNorm(32, C): all statistics in f32 ---------------------------
    # Per-group mean/var via a tiny block-diagonal averaging matmul (negligible work vs.
    # the attention matmuls; avoids in-kernel channel/group reshapes that would relayout).
    row_sum = jnp.sum(x, axis=-1, keepdims=True)                        # (C, 1)
    mean_c = jnp.dot(p_ref[...], row_sum,
                     preferred_element_type=jnp.float32)                # (C, 1) group mean
    xc = x - mean_c
    sq_sum = jnp.sum(xc * xc, axis=-1, keepdims=True)                   # (C, 1)
    var_c = jnp.dot(p_ref[...], sq_sum,
                    preferred_element_type=jnp.float32)                 # (C, 1) group var
    xn = (xc * lax.rsqrt(var_c + GN_EPS)) * gamma_ref[...] + beta_ref[...]   # (C, T) f32

    # ---- qkv 1x1 conv (bf16 operands, f32 accumulation), staged to bf16 VMEM ----
    qkv = jnp.dot(wqkv_ref[...], xn.astype(jnp.bfloat16),
                  preferred_element_type=jnp.float32) + bqkv_ref[...]   # (3C, T) f32
    # (3C, T) -> (H, 3ch, T): splits the sublane dim on a packed-tile boundary (ch % 16 == 0)
    qkv_ref[...] = qkv.reshape(num_heads, 3 * ch, T).astype(jnp.bfloat16)

    # ---- multi-head attention (QKVAttention semantics) ----------------------
    # fori_loop (not a static unroll) so only one head's (T,T) intermediates are live.
    def head_body(h, carry):
        qkv_h = qkv_ref[h]                     # (3ch, T) bf16, dynamic leading index
        q = qkv_h[:ch]                         # (ch, T) bf16, already scaled by 1/sqrt(ch)
        k = qkv_h[ch:2 * ch]                   # (ch, T) bf16
        v = qkv_h[2 * ch:]                     # (ch, T) bf16

        # w[s, t] = sum_c k[c,s] * q[c,t]   (keys on sublanes, queries on lanes)
        w = lax.dot_general(k, q, (((0,), (0,)), ((), ())),
                            preferred_element_type=jnp.float32)         # (T_s, T_q) f32
        w = w - jnp.max(w, axis=0, keepdims=True)                       # stabilize
        e = jnp.exp(w)                                                  # (T_s, T_q) f32 (EUP)
        denom = jnp.sum(e, axis=0, keepdims=True)                       # (1, T_q) f32

        # un-normalized AV: canonical MXU matmul, e consumed K-major (contracted on axis 0)
        a = jnp.dot(v, e.astype(jnp.bfloat16),
                    preferred_element_type=jnp.float32)                 # (ch, T_q) f32
        # post-AV normalization: O(ch*T) instead of normalizing the (T,T) probs
        a = a * pl.reciprocal(denom, approx=True)

        att_ref[h] = a.astype(jnp.bfloat16)    # dynamic leading-index store, no concat
        return carry

    lax.fori_loop(0, num_heads, head_body, 0)

    # ---- proj_out 1x1 conv + residual (f32 accumulate / residual) ----------
    att = att_ref[...].reshape(C, T)                                    # (C, T) bf16
    proj = jnp.dot(wp_ref[...], att,
                   preferred_element_type=jnp.float32) + bp_ref[...]    # (C, T) f32
    out_ref[0] = x + proj


def attention_block_pallas(x, params, num_heads):
    """x: (B, C, H, W) float32. Returns (B, C, H, W)."""
    B, C, H, W = x.shape
    T = H * W
    assert C % NUM_GROUPS == 0, "GroupNorm(32, C) requires channels % 32 == 0"
    assert C % num_heads == 0
    ch = C // num_heads
    # Layout requirements (previously comments, now enforced): lane-dense tiles and
    # packed-sublane-aligned per-head slabs for the bf16 scratch stores/loads.
    assert T % 128 == 0, "T = H*W must be a multiple of 128 (lane-dense tiles)"
    assert ch % 16 == 0, "head dim must be a multiple of 16 (bf16 sublane packing)"

    x3 = x.reshape(B, C, T)

    gamma, beta, wqkv, bqkv, wp, bp = (
        params["gamma"], params["beta"], params["wqkv"],
        params["bqkv"], params["wp"], params["bp"])

    # Fold the attention scale (scale*scale == 1/sqrt(ch)) into the q rows of Wqkv / bqkv
    # at trace time (free), so the kernel does no per-head scaling multiply.
    row = jnp.arange(3 * C)
    is_q_row = (row % (3 * ch)) < ch
    row_scale = jnp.where(is_q_row, 1.0 / math.sqrt(ch), 1.0).astype(jnp.float32)
    wqkv_s = (wqkv * row_scale[:, None]).astype(jnp.bfloat16)
    bqkv_s = (bqkv * row_scale).reshape(3 * C, 1)

    # block-diagonal per-group averaging matrix (C, C), f32
    cs = C // NUM_GROUPS
    group_id = jnp.arange(C) // cs
    P = (group_id[:, None] == group_id[None, :]).astype(jnp.float32) / (cs * T)

    kernel = functools.partial(_attention_block_kernel, num_heads=num_heads)

    out = pl.pallas_call(
        kernel,
        out_shape=jax.ShapeDtypeStruct((B, C, T), jnp.float32),
        grid=(B,),
        in_specs=[
            pl.BlockSpec((1, C, T), lambda b: (b, 0, 0)),     # x
            pl.BlockSpec((C, C), lambda b: (0, 0)),           # P
            pl.BlockSpec((C, 1), lambda b: (0, 0)),           # gamma
            pl.BlockSpec((C, 1), lambda b: (0, 0)),           # beta
            pl.BlockSpec((3 * C, C), lambda b: (0, 0)),       # Wqkv (bf16, q rows scaled)
            pl.BlockSpec((3 * C, 1), lambda b: (0, 0)),       # bqkv (q rows scaled)
            pl.BlockSpec((C, C), lambda b: (0, 0)),           # Wp (bf16)
            pl.BlockSpec((C, 1), lambda b: (0, 0)),           # bp
        ],
        out_specs=pl.BlockSpec((1, C, T), lambda b: (b, 0, 0)),
        scratch_shapes=[
            pltpu.VMEM((num_heads, 3 * ch, T), jnp.bfloat16),  # staged qkv (per-head slabs)
            pltpu.VMEM((num_heads, ch, T), jnp.bfloat16),      # per-head attention outputs
        ],
        input_output_aliases={0: 0},                           # x slab fully read before write
        compiler_params=pltpu.CompilerParams(
            dimension_semantics=("parallel",),
            vmem_limit_bytes=48 * 1024 * 1024),                # headroom under v7x 64 MiB/TC
    )(x3, P, gamma.reshape(C, 1), beta.reshape(C, 1),
      wqkv_s, bqkv_s, wp.astype(jnp.bfloat16), bp.reshape(C, 1))

    return out.reshape(B, C, H, W)


def attention_block_ref(x, params, num_heads):
    """Pure-JAX f32 reference mirroring the PyTorch forward pass exactly."""
    B, C, H, W = x.shape
    T = H * W
    x3 = x.reshape(B, C, T)

    gamma, beta, wqkv, bqkv, wp, bp = (
        params["gamma"], params["beta"], params["wqkv"],
        params["bqkv"], params["wp"], params["bp"])

    # GroupNorm(32, C)
    cs = C // NUM_GROUPS
    xg = x3.reshape(B, NUM_GROUPS, cs * T)
    mean = jnp.mean(xg, axis=-1, keepdims=True)
    var = jnp.mean((xg - mean) ** 2, axis=-1, keepdims=True)
    xn = ((xg - mean) / jnp.sqrt(var + GN_EPS)).reshape(B, C, T)
    xn = xn * gamma[None, :, None] + beta[None, :, None]

    # qkv 1x1 conv
    qkv = jnp.einsum("oc,bct->bot", wqkv, xn) + bqkv[None, :, None]     # (B, 3C, T)

    # QKVAttention
    ch = C // num_heads
    qkv_h = qkv.reshape(B * num_heads, 3 * ch, T)
    q, k, v = qkv_h[:, :ch], qkv_h[:, ch:2 * ch], qkv_h[:, 2 * ch:]
    scale = 1.0 / math.sqrt(math.sqrt(ch))
    w = jnp.einsum("bct,bcs->bts", q * scale, k * scale)
    w = jax.nn.softmax(w.astype(jnp.float32), axis=-1)
    a = jnp.einsum("bts,bcs->bct", w, v).reshape(B, C, T)

    # proj_out + residual
    h = jnp.einsum("oc,bct->bot", wp, a) + bp[None, :, None]
    return (x3 + h).reshape(B, C, H, W)


def make_params(key, channels):
    ks = jax.random.split(key, 4)
    C = channels
    # deterministic synthetic parameters (shapes from AttentionBlock.__init__)
    gamma = jnp.ones((C,), jnp.float32)
    beta = jnp.zeros((C,), jnp.float32)
    wqkv = 0.05 * jax.random.normal(ks[0], (3 * C, C), jnp.float32)
    bqkv = 0.01 * jax.random.normal(ks[1], (3 * C,), jnp.float32)
    wp = 0.05 * jax.random.normal(ks[2], (C, C), jnp.float32)
    bp = 0.01 * jax.random.normal(ks[3], (C,), jnp.float32)
    return dict(gamma=gamma, beta=beta, wqkv=wqkv, bqkv=bqkv, wp=wp, bp=bp)


if __name__ == "__main__":
    # channels divisible by 32 (GroupNorm) and num_heads; T = H*W = 256 (lane-dense),
    # head dim ch = 32 (multiple of 16 -> packed-sublane-aligned bf16 slabs).
    B, C, H, W = 2, 64, 16, 16
    NUM_HEADS = 2

    key = jax.random.PRNGKey(0)
    kx, kp = jax.random.split(key)
    x = jax.random.normal(kx, (B, C, H, W), jnp.float32)
    params = make_params(kp, C)

    fwd = jax.jit(functools.partial(attention_block_pallas, num_heads=NUM_HEADS))
    out = jax.block_until_ready(fwd(x, params))

    ref = attention_block_ref(x, params, NUM_HEADS)
    assert out.shape == (B, C, H, W)
    # bf16 MXU operands (f32 accumulation) + approx reciprocal -> relaxed tolerance
    max_err = jnp.max(jnp.abs(out - ref))
    assert jnp.allclose(out, ref, rtol=2e-2, atol=2e-2), (
        f"Pallas kernel mismatch vs reference: max err {max_err}")

    print("KERNEL_OK")
</pallas_src>

<mosaic_0001>
module attributes {stable_mosaic.version = 11 : i64} {
  func.func @_attention_block_kernel(%arg0: i32, %arg1: memref<1x64x256xf32, #tpu.memory_space<vmem>>, %arg2: memref<64x64xf32, #tpu.memory_space<vmem>>, %arg3: memref<64x1xf32, #tpu.memory_space<vmem>>, %arg4: memref<64x1xf32, #tpu.memory_space<vmem>>, %arg5: memref<192x64xbf16, #tpu.memory_space<vmem>>, %arg6: memref<192x1xf32, #tpu.memory_space<vmem>>, %arg7: memref<64x64xbf16, #tpu.memory_space<vmem>>, %arg8: memref<64x1xf32, #tpu.memory_space<vmem>>, %arg9: memref<1x64x256xf32, #tpu.memory_space<vmem>>, %arg10: memref<2x96x256xbf16, #tpu.memory_space<vmem>>, %arg11: memref<2x32x256xbf16, #tpu.memory_space<vmem>>) attributes {dimension_semantics = [#tpu.dimension_semantics<parallel>], iteration_bounds = array<i64: 2>, scalar_prefetch = 0 : i64, scratch_operands = 2 : i64, tpu.core_type = #tpu.core_type<tc>, window_params = [{transform_indices = @transform_0, window_bounds = array<i64: 1, 64, 256>}, {pipeline_mode = #tpu.pipeline_mode<synchronous>, transform_indices = @transform_1, window_bounds = array<i64: 64, 64>}, {pipeline_mode = #tpu.pipeline_mode<synchronous>, transform_indices = @transform_2, window_bounds = array<i64: 64, 1>}, {pipeline_mode = #tpu.pipeline_mode<synchronous>, transform_indices = @transform_3, window_bounds = array<i64: 64, 1>}, {pipeline_mode = #tpu.pipeline_mode<synchronous>, transform_indices = @transform_4, window_bounds = array<i64: 192, 64>}, {pipeline_mode = #tpu.pipeline_mode<synchronous>, transform_indices = @transform_5, window_bounds = array<i64: 192, 1>}, {pipeline_mode = #tpu.pipeline_mode<synchronous>, transform_indices = @transform_6, window_bounds = array<i64: 64, 64>}, {pipeline_mode = #tpu.pipeline_mode<synchronous>, transform_indices = @transform_7, window_bounds = array<i64: 64, 1>}, {transform_indices = @transform_8, window_bounds = array<i64: 1, 64, 256>}]} {
    %c0 = arith.constant 0 : index
    %c0_0 = arith.constant 0 : index
    %c0_1 = arith.constant 0 : index
    %0 = vector.load %arg1[%c0, %c0_0, %c0_1] : memref<1x64x256xf32, #tpu.memory_space<vmem>>, vector<1x64x256xf32>
    %1 = vector.shape_cast %0 : vector<1x64x256xf32> to vector<64x256xf32>
    %cst = arith.constant dense<0.000000e+00> : vector<64xf32>
    %2 = vector.multi_reduction <add>, %1, %cst [1] : vector<64x256xf32> to vector<64xf32>
    %3 = vector.shape_cast %2 : vector<64xf32> to vector<64x1xf32>
    %c0_2 = arith.constant 0 : index
    %c0_3 = arith.constant 0 : index
    %4 = vector.load %arg2[%c0_2, %c0_3] : memref<64x64xf32, #tpu.memory_space<vmem>>, vector<64x64xf32>
    %cst_4 = arith.constant dense<0.000000e+00> : vector<64x1xf32>
    %5 = tpu.matmul %4, %3, %cst_4 {dimension_numbers = #tpu.dot_dimension_numbers<[1], [0], [0], [1], [0, 0, 1, 1], [], []>} : vector<64x64xf32>, vector<64x1xf32>, vector<64x1xf32> -> vector<64x1xf32>
    %6 = vector.broadcast %5 : vector<64x1xf32> to vector<64x256xf32>
    %7 = arith.subf %1, %6 : vector<64x256xf32>
    %8 = arith.mulf %7, %7 : vector<64x256xf32>
    %cst_5 = arith.constant dense<0.000000e+00> : vector<64xf32>
    %9 = vector.multi_reduction <add>, %8, %cst_5 [1] : vector<64x256xf32> to vector<64xf32>
    %10 = vector.shape_cast %9 : vector<64xf32> to vector<64x1xf32>
    %c0_6 = arith.constant 0 : index
    %c0_7 = arith.constant 0 : index
    %11 = vector.load %arg2[%c0_6, %c0_7] : memref<64x64xf32, #tpu.memory_space<vmem>>, vector<64x64xf32>
    %cst_8 = arith.constant dense<0.000000e+00> : vector<64x1xf32>
    %12 = tpu.matmul %11, %10, %cst_8 {dimension_numbers = #tpu.dot_dimension_numbers<[1], [0], [0], [1], [0, 0, 1, 1], [], []>} : vector<64x64xf32>, vector<64x1xf32>, vector<64x1xf32> -> vector<64x1xf32>
    %cst_9 = arith.constant 9.99999974E-6 : f32
    %13 = vector.broadcast %cst_9 : f32 to vector<64x1xf32>
    %14 = arith.addf %12, %13 : vector<64x1xf32>
    %15 = math.rsqrt %14 : vector<64x1xf32>
    %16 = vector.broadcast %15 : vector<64x1xf32> to vector<64x256xf32>
    %17 = arith.mulf %7, %16 : vector<64x256xf32>
    %c0_10 = arith.constant 0 : index
    %c0_11 = arith.constant 0 : index
    %18 = vector.load %arg3[%c0_10, %c0_11] : memref<64x1xf32, #tpu.memory_space<vmem>>, vector<64x1xf32>
    %19 = vector.broadcast %18 : vector<64x1xf32> to vector<64x256xf32>
    %20 = arith.mulf %17, %19 : vector<64x256xf32>
    %c0_12 = arith.constant 0 : index
    %c0_13 = arith.constant 0 : index
    %21 = vector.load %arg4[%c0_12, %c0_13] : memref<64x1xf32, #tpu.memory_space<vmem>>, vector<64x1xf32>
    %22 = vector.broadcast %21 : vector<64x1xf32> to vector<64x256xf32>
    %23 = arith.addf %20, %22 : vector<64x256xf32>
    %c0_14 = arith.constant 0 : index
    %c0_15 = arith.constant 0 : index
    %24 = vector.load %arg5[%c0_14, %c0_15] : memref<192x64xbf16, #tpu.memory_space<vmem>>, vector<192x64xbf16>
    %25 = arith.truncf %23 : vector<64x256xf32> to vector<64x256xbf16>
    %cst_16 = arith.constant dense<0.000000e+00> : vector<192x256xf32>
    %26 = tpu.matmul %24, %25, %cst_16 {dimension_numbers = #tpu.dot_dimension_numbers<[1], [0], [0], [1], [0, 0, 1, 1], [], []>} : vector<192x64xbf16>, vector<64x256xbf16>, vector<192x256xf32> -> vector<192x256xf32>
    %c0_17 = arith.constant 0 : index
    %c0_18 = arith.constant 0 : index
    %27 = vector.load %arg6[%c0_17, %c0_18] : memref<192x1xf32, #tpu.memory_space<vmem>>, vector<192x1xf32>
    %28 = vector.broadcast %27 : vector<192x1xf32> to vector<192x256xf32>
    %29 = arith.addf %26, %28 : vector<192x256xf32>
    %30 = vector.shape_cast %29 : vector<192x256xf32> to vector<2x96x256xf32>
    %31 = arith.truncf %30 : vector<2x96x256xf32> to vector<2x96x256xbf16>
    %c0_19 = arith.constant 0 : index
    %c0_20 = arith.constant 0 : index
    %c0_21 = arith.constant 0 : index
    %32 = vector.load %arg10[%c0_19, %c0_20, %c0_21] : memref<2x96x256xbf16, #tpu.memory_space<vmem>>, vector<2x96x256xbf16>
    tpu.vector_store %arg10[%c0_19, %c0_20, %c0_21], %31 {strides = array<i32>} : memref<2x96x256xbf16, #tpu.memory_space<vmem>>, vector<2x96x256xbf16>,
    %c0_i32 = arith.constant 0 : i32
    %c2_i32 = arith.constant 2 : i32
    %33 = arith.addi %c0_i32, %c2_i32 : i32
    %c1_i32 = arith.constant 1 : i32
    scf.for %arg12 = %c0_i32 to %33 step %c1_i32  : i32 {
      %45 = arith.index_cast %arg12 : i32 to index
      %c0_34 = arith.constant 0 : index
      %c0_35 = arith.constant 0 : index
      %46 = vector.load %arg10[%45, %c0_34, %c0_35] : memref<2x96x256xbf16, #tpu.memory_space<vmem>>, vector<1x96x256xbf16>
      %47 = vector.shape_cast %46 : vector<1x96x256xbf16> to vector<96x256xbf16>
      %48 = vector.extract_strided_slice %47 {offsets = [0, 0], sizes = [32, 256], strides = [1, 1]} : vector<96x256xbf16> to vector<32x256xbf16>
      %49 = vector.extract_strided_slice %47 {offsets = [32, 0], sizes = [32, 256], strides = [1, 1]} : vector<96x256xbf16> to vector<32x256xbf16>
      %50 = vector.extract_strided_slice %47 {offsets = [64, 0], sizes = [32, 256], strides = [1, 1]} : vector<96x256xbf16> to vector<32x256xbf16>
      %cst_36 = arith.constant dense<0.000000e+00> : vector<256x256xf32>
      %51 = tpu.matmul %49, %48, %cst_36 {dimension_numbers = #tpu.dot_dimension_numbers<[0], [0], [1], [1], [0, 1, 1, 1], [], []>} : vector<32x256xbf16>, vector<32x256xbf16>, vector<256x256xf32> -> vector<256x256xf32>
      %cst_37 = arith.constant dense<0xFF800000> : vector<256xf32>
      %52 = vector.multi_reduction <maximumf>, %51, %cst_37 [0] : vector<256x256xf32> to vector<256xf32>
      %53 = vector.shape_cast %52 : vector<256xf32> to vector<1x256xf32>
      %54 = vector.broadcast %53 : vector<1x256xf32> to vector<256x256xf32>
      %55 = arith.subf %51, %54 : vector<256x256xf32>
      %56 = math.exp %55 : vector<256x256xf32>
      %cst_38 = arith.constant dense<0.000000e+00> : vector<256xf32>
      %57 = vector.multi_reduction <add>, %56, %cst_38 [0] : vector<256x256xf32> to vector<256xf32>
      %58 = vector.shape_cast %57 : vector<256xf32> to vector<1x256xf32>
      %59 = arith.truncf %56 : vector<256x256xf32> to vector<256x256xbf16>
      %cst_39 = arith.constant dense<0.000000e+00> : vector<32x256xf32>
      %60 = tpu.matmul %50, %59, %cst_39 {dimension_numbers = #tpu.dot_dimension_numbers<[1], [0], [0], [1], [0, 0, 1, 1], [], []>} : vector<32x256xbf16>, vector<256x256xbf16>, vector<32x256xf32> -> vector<32x256xf32>
      %61 = tpu.reciprocal %58 {approx = true} : vector<1x256xf32> -> vector<1x256xf32>
      %62 = vector.broadcast %61 : vector<1x256xf32> to vector<32x256xf32>
      %63 = arith.mulf %60, %62 : vector<32x256xf32>
      %64 = arith.truncf %63 : vector<32x256xf32> to vector<32x256xbf16>
      %65 = arith.index_cast %arg12 : i32 to index
      %c0_40 = arith.constant 0 : index
      %c0_41 = arith.constant 0 : index
      %66 = vector.load %arg11[%65, %c0_40, %c0_41] : memref<2x32x256xbf16, #tpu.memory_space<vmem>>, vector<1x32x256xbf16>
      %67 = vector.shape_cast %66 : vector<1x32x256xbf16> to vector<32x256xbf16>
      %68 = vector.shape_cast %64 : vector<32x256xbf16> to vector<1x32x256xbf16>
      tpu.vector_store %arg11[%65, %c0_40, %c0_41], %68 {strides = array<i32>} : memref<2x32x256xbf16, #tpu.memory_space<vmem>>, vector<1x32x256xbf16>,
    }
    %c2_i32_22 = arith.constant 2 : i32
    %c0_23 = arith.constant 0 : index
    %c0_24 = arith.constant 0 : index
    %c0_25 = arith.constant 0 : index
    %34 = vector.load %arg11[%c0_23, %c0_24, %c0_25] : memref<2x32x256xbf16, #tpu.memory_space<vmem>>, vector<2x32x256xbf16>
    %35 = vector.shape_cast %34 : vector<2x32x256xbf16> to vector<64x256xbf16>
    %c0_26 = arith.constant 0 : index
    %c0_27 = arith.constant 0 : index
    %36 = vector.load %arg7[%c0_26, %c0_27] : memref<64x64xbf16, #tpu.memory_space<vmem>>, vector<64x64xbf16>
    %cst_28 = arith.constant dense<0.000000e+00> : vector<64x256xf32>
    %37 = tpu.matmul %36, %35, %cst_28 {dimension_numbers = #tpu.dot_dimension_numbers<[1], [0], [0], [1], [0, 0, 1, 1], [], []>} : vector<64x64xbf16>, vector<64x256xbf16>, vector<64x256xf32> -> vector<64x256xf32>
    %c0_29 = arith.constant 0 : index
    %c0_30 = arith.constant 0 : index
    %38 = vector.load %arg8[%c0_29, %c0_30] : memref<64x1xf32, #tpu.memory_space<vmem>>, vector<64x1xf32>
    %39 = vector.broadcast %38 : vector<64x1xf32> to vector<64x256xf32>
    %40 = arith.addf %37, %39 : vector<64x256xf32>
    %41 = arith.addf %1, %40 : vector<64x256xf32>
    %c0_31 = arith.constant 0 : index
    %c0_32 = arith.constant 0 : index
    %c0_33 = arith.constant 0 : index
    %42 = vector.load %arg9[%c0_31, %c0_32, %c0_33] : memref<1x64x256xf32, #tpu.memory_space<vmem>>, vector<1x64x256xf32>
    %43 = vector.shape_cast %42 : vector<1x64x256xf32> to vector<64x256xf32>
    %44 = vector.shape_cast %41 : vector<64x256xf32> to vector<1x64x256xf32>
    tpu.vector_store %arg9[%c0_31, %c0_32, %c0_33], %44 {strides = array<i32>} : memref<1x64x256xf32, #tpu.memory_space<vmem>>, vector<1x64x256xf32>,
    return
  }
  func.func @transform_0(%arg0: i32) -> (i32, i32, i32) {
    %c0_i32 = arith.constant 0 : i32
    %c0_i32_0 = arith.constant 0 : i32
    %c0_i32_1 = arith.constant 0 : i32
    return %arg0, %c0_i32, %c0_i32_0 : i32, i32, i32
  }
  func.func @transform_1(%arg0: i32) -> (i32, i32) {
    %c0_i32 = arith.constant 0 : i32
    %c0_i32_0 = arith.constant 0 : i32
    %c0_i32_1 = arith.constant 0 : i32
    return %c0_i32, %c0_i32_0 : i32, i32
  }
  func.func @transform_2(%arg0: i32) -> (i32, i32) {
    %c0_i32 = arith.constant 0 : i32
    %c0_i32_0 = arith.constant 0 : i32
    %c0_i32_1 = arith.constant 0 : i32
    return %c0_i32, %c0_i32_0 : i32, i32
  }
  func.func @transform_3(%arg0: i32) -> (i32, i32) {
    %c0_i32 = arith.constant 0 : i32
    %c0_i32_0 = arith.constant 0 : i32
    %c0_i32_1 = arith.constant 0 : i32
    return %c0_i32, %c0_i32_0 : i32, i32
  }
  func.func @transform_4(%arg0: i32) -> (i32, i32) {
    %c0_i32 = arith.constant 0 : i32
    %c0_i32_0 = arith.constant 0 : i32
    %c0_i32_1 = arith.constant 0 : i32
    return %c0_i32, %c0_i32_0 : i32, i32
  }
  func.func @transform_5(%arg0: i32) -> (i32, i32) {
    %c0_i32 = arith.constant 0 : i32
    %c0_i32_0 = arith.constant 0 : i32
    %c0_i32_1 = arith.constant 0 : i32
    return %c0_i32, %c0_i32_0 : i32, i32
  }
  func.func @transform_6(%arg0: i32) -> (i32, i32) {
    %c0_i32 = arith.constant 0 : i32
    %c0_i32_0 = arith.constant 0 : i32
    %c0_i32_1 = arith.constant 0 : i32
    return %c0_i32, %c0_i32_0 : i32, i32
  }
  func.func @transform_7(%arg0: i32) -> (i32, i32) {
    %c0_i32 = arith.constant 0 : i32
    %c0_i32_0 = arith.constant 0 : i32
    %c0_i32_1 = arith.constant 0 : i32
    return %c0_i32, %c0_i32_0 : i32, i32
  }
  func.func @transform_8(%arg0: i32) -> (i32, i32, i32) {
    %c0_i32 = arith.constant 0 : i32
    %c0_i32_0 = arith.constant 0 : i32
    %c0_i32_1 = arith.constant 0 : i32
    return %arg0, %c0_i32, %c0_i32_0 : i32, i32, i32
  }
}

</mosaic_0001>

<llo_original>
// kernel: attention_block_pallas.1
$region0: #{attention_block_pallas.1}
  #allocation0 [shape = 'u32[]', space=smem, size = 0x4, offset = 0x4, fixed_abs, tag = 'smem constant byte address 0x4 - core index']
  #allocation1 [shape = 'u32[144,128]{1,0:T(1,128)}', space=vmem, size = 0x12000, scoped, tag = 'internal scratch']
  #allocation2 [shape = 'bf16[2,96,256]{2,1,0:T(16,128)(2,1)}', space=vmem, size = 0x18000, scoped, tag = 'scratch operand']
  #allocation3 [shape = 'bf16[2,32,256]{2,1,0:T(16,128)(2,1)}', space=vmem, size = 0x8000, scoped, tag = 'scratch operand']
  %s0 = inlined_call_operand.vmem [shape: f32[2,64,256], index: 0, kind: input, shape index: {}, may-alias: {0,8}]
  %s1 = inlined_call_operand.vmem [shape: f32[64,64], index: 1, kind: input, shape index: {}]
  %s2 = inlined_call_operand.vmem [shape: f32[64,1], index: 2, kind: input, shape index: {}]
  %s3 = inlined_call_operand.vmem [shape: f32[64,1], index: 3, kind: input, shape index: {}]
  %s4 = inlined_call_operand.vmem [shape: bf16[192,64], index: 4, kind: input, shape index: {}]
  %s5 = inlined_call_operand.vmem [shape: f32[192,1], index: 5, kind: input, shape index: {}]
  %s6 = inlined_call_operand.vmem [shape: bf16[64,64], index: 6, kind: input, shape index: {}]
  %s7 = inlined_call_operand.vmem [shape: f32[64,1], index: 7, kind: input, shape index: {}]
  %s8 = inlined_call_operand.vmem [shape: f32[2,64,256], index: 8, kind: output, shape index: {}, may-alias: {0,8}]
  %s9 = sld [smem:[#allocation0]]
  $region72: #{attention_block_pallas.1} parent=0
    _
  %s11 = ssub.s32 1, %s9
  %s12 = scalar_select 0, %s11, %s9
  loop: start=0, step=1, limit=4
  $region2: #{attention_block_pallas.1} parent=0 // loop_pre_header
    _
  $region3: #{attention_block_pallas.1} parent=0 // loop_header
    %s14 = sphi 0, %s18
    %p15 = scmp.ge.s32.totalorder %s14, 4
    %s24 = sphi 0, %s26
    %s27 = sphi 0, %s24
    %s28 = sphi 0, %s27
    %s44 = sphi 0, %s28
    %s48 = sphi 0, %s48
    %s50 = sphi 0, %s48
    %s51 = sphi 0, %s50
    %s65 = sphi 0, %s51
    %s69 = sphi 0, %s69
    %s71 = sphi 0, %s69
    %s72 = sphi 0, %s71
    %s86 = sphi 0, %s72
    %s90 = sphi 0, %s90
    %s92 = sphi 0, %s90
    %s93 = sphi 0, %s92
    %s107 = sphi 0, %s93
    %s111 = sphi 0, %s111
    %s113 = sphi 0, %s111
    %s114 = sphi 0, %s113
    %s128 = sphi 0, %s114
    %s132 = sphi 0, %s132
    %s134 = sphi 0, %s132
    %s135 = sphi 0, %s134
    %s149 = sphi 0, %s135
    %s153 = sphi 0, %s153
    %s155 = sphi 0, %s153
    %s156 = sphi 0, %s155
    %s170 = sphi 0, %s156
    %s174 = sphi 0, %s174
    %s176 = sphi 0, %s174
    %s177 = sphi 0, %s176
    %s191 = sphi 0, %s177
    %s197 = sphi 0, %s199
    %s200 = sphi 0, %s197
    %s201 = sphi 0, %s200
    %s217 = sphi 0, %s201
  $region4: #{attention_block_pallas.1} parent=0 // loop_header_branch
    %17 = sbr.rel (%p15) target = $region8
  $region5: #{attention_block_pallas.1} parent=0 // loop_body
    %s19 = ssub.s32 %s14, 1
    %s20 = ssub.s32 %s14, 2
    %s21 = sadd.s32 %s14, 1
    %s22 = ssub.s32 %s14, %s21
    %p23 = scmp.eq.s32.totalorder %s22, 0
    %s25 = sadd.s32 %s24, 1
    %s26 = scalar_select %p23, %s24, %s25
    %p29 = pneg %p23
    %p30 = scmp.eq.s32.totalorder %s14, 1
    %p31 = por %p29, %p30
    %p32 = scmp.ne.s32.totalorder %s24, %s27
    %p33 = scmp.eq.s32.totalorder %s14, 0
    %p34 = por %p32, %p33
    %p35 = scmp.ne.s32.totalorder %s24, %s27
    %p36 = scmp.eq.s32.totalorder %s19, 1
    %p37 = por %p35, %p36
    %p38 = scmp.ne.s32.totalorder %s27, %s28
    %p39 = scmp.eq.s32.totalorder %s19, 0
    %p40 = por %p38, %p39
    %p41 = scmp.ne.s32.totalorder %s27, %s28
    %p42 = scmp.eq.s32.totalorder %s20, 1
    %p43 = por %p41, %p42
    %p45 = scmp.ne.s32.totalorder %s28, %s44
    %p46 = scmp.eq.s32.totalorder %s20, 0
    %p47 = por %p45, %p46
    %s49 = sadd.s32 %s48, 1
    %p52 = scmp.eq.s32.totalorder %s14, 1
    %p53 = scmp.ne.s32.totalorder %s48, %s50
    %p54 = scmp.eq.s32.totalorder %s14, 0
    %p55 = por %p53, %p54
    %p56 = scmp.ne.s32.totalorder %s48, %s50
    %p57 = scmp.eq.s32.totalorder %s19, 1
    %p58 = por %p56, %p57
    %p59 = scmp.ne.s32.totalorder %s50, %s51
    %p60 = scmp.eq.s32.totalorder %s19, 0
    %p61 = por %p59, %p60
    %p62 = scmp.ne.s32.totalorder %s50, %s51
    %p63 = scmp.eq.s32.totalorder %s20, 1
    %p64 = por %p62, %p63
    %p66 = scmp.ne.s32.totalorder %s51, %s65
    %p67 = scmp.eq.s32.totalorder %s20, 0
    %p68 = por %p66, %p67
    %s70 = sadd.s32 %s69, 1
    %p73 = scmp.eq.s32.totalorder %s14, 1
    %p74 = scmp.ne.s32.totalorder %s69, %s71
    %p75 = scmp.eq.s32.totalorder %s14, 0
    %p76 = por %p74, %p75
    %p77 = scmp.ne.s32.totalorder %s69, %s71
    %p78 = scmp.eq.s32.totalorder %s19, 1
    %p79 = por %p77, %p78
    %p80 = scmp.ne.s32.totalorder %s71, %s72
    %p81 = scmp.eq.s32.totalorder %s19, 0
    %p82 = por %p80, %p81
    %p83 = scmp.ne.s32.totalorder %s71, %s72
    %p84 = scmp.eq.s32.totalorder %s20, 1
    %p85 = por %p83, %p84
    %p87 = scmp.ne.s32.totalorder %s72, %s86
    %p88 = scmp.eq.s32.totalorder %s20, 0
    %p89 = por %p87, %p88
    %s91 = sadd.s32 %s90, 1
    %p94 = scmp.eq.s32.totalorder %s14, 1
    %p95 = scmp.ne.s32.totalorder %s90, %s92
    %p96 = scmp.eq.s32.totalorder %s14, 0
    %p97 = por %p95, %p96
    %p98 = scmp.ne.s32.totalorder %s90, %s92
    %p99 = scmp.eq.s32.totalorder %s19, 1
    %p100 = por %p98, %p99
    %p101 = scmp.ne.s32.totalorder %s92, %s93
    %p102 = scmp.eq.s32.totalorder %s19, 0
    %p103 = por %p101, %p102
    %p104 = scmp.ne.s32.totalorder %s92, %s93
    %p105 = scmp.eq.s32.totalorder %s20, 1
    %p106 = por %p104, %p105
    %p108 = scmp.ne.s32.totalorder %s93, %s107
    %p109 = scmp.eq.s32.totalorder %s20, 0
    %p110 = por %p108, %p109
    %s112 = sadd.s32 %s111, 1
    %p115 = scmp.eq.s32.totalorder %s14, 1
    %p116 = scmp.ne.s32.totalorder %s111, %s113
    %p117 = scmp.eq.s32.totalorder %s14, 0
    %p118 = por %p116, %p117
    %p119 = scmp.ne.s32.totalorder %s111, %s113
    %p120 = scmp.eq.s32.totalorder %s19, 1
    %p121 = por %p119, %p120
    %p122 = scmp.ne.s32.totalorder %s113, %s114
    %p123 = scmp.eq.s32.totalorder %s19, 0
    %p124 = por %p122, %p123
    %p125 = scmp.ne.s32.totalorder %s113, %s114
    %p126 = scmp.eq.s32.totalorder %s20, 1
    %p127 = por %p125, %p126
    %p129 = scmp.ne.s32.totalorder %s114, %s128
    %p130 = scmp.eq.s32.totalorder %s20, 0
    %p131 = por %p129, %p130
    %s133 = sadd.s32 %s132, 1
    %p136 = scmp.eq.s32.totalorder %s14, 1
    %p137 = scmp.ne.s32.totalorder %s132, %s134
    %p138 = scmp.eq.s32.totalorder %s14, 0
    %p139 = por %p137, %p138
    %p140 = scmp.ne.s32.totalorder %s132, %s134
    %p141 = scmp.eq.s32.totalorder %s19, 1
    %p142 = por %p140, %p141
    %p143 = scmp.ne.s32.totalorder %s134, %s135
    %p144 = scmp.eq.s32.totalorder %s19, 0
    %p145 = por %p143, %p144
    %p146 = scmp.ne.s32.totalorder %s134, %s135
    %p147 = scmp.eq.s32.totalorder %s20, 1
    %p148 = por %p146, %p147
    %p150 = scmp.ne.s32.totalorder %s135, %s149
    %p151 = scmp.eq.s32.totalorder %s20, 0
    %p152 = por %p150, %p151
    %s154 = sadd.s32 %s153, 1
    %p157 = scmp.eq.s32.totalorder %s14, 1
    %p158 = scmp.ne.s32.totalorder %s153, %s155
    %p159 = scmp.eq.s32.totalorder %s14, 0
    %p160 = por %p158, %p159
    %p161 = scmp.ne.s32.totalorder %s153, %s155
    %p162 = scmp.eq.s32.totalorder %s19, 1
    %p163 = por %p161, %p162
    %p164 = scmp.ne.s32.totalorder %s155, %s156
    %p165 = scmp.eq.s32.totalorder %s19, 0
    %p166 = por %p164, %p165
    %p167 = scmp.ne.s32.totalorder %s155, %s156
    %p168 = scmp.eq.s32.totalorder %s20, 1
    %p169 = por %p167, %p168
    %p171 = scmp.ne.s32.totalorder %s156, %s170
    %p172 = scmp.eq.s32.totalorder %s20, 0
    %p173 = por %p171, %p172
    %s175 = sadd.s32 %s174, 1
    %p178 = scmp.eq.s32.totalorder %s14, 1
    %p179 = scmp.ne.s32.totalorder %s174, %s176
    %p180 = scmp.eq.s32.totalorder %s14, 0
    %p181 = por %p179, %p180
    %p182 = scmp.ne.s32.totalorder %s174, %s176
    %p183 = scmp.eq.s32.totalorder %s19, 1
    %p184 = por %p182, %p183
    %p185 = scmp.ne.s32.totalorder %s176, %s177
    %p186 = scmp.eq.s32.totalorder %s19, 0
    %p187 = por %p185, %p186
    %p188 = scmp.ne.s32.totalorder %s176, %s177
    %p189 = scmp.eq.s32.totalorder %s20, 1
    %p190 = por %p188, %p189
    %p192 = scmp.ne.s32.totalorder %s177, %s191
    %p193 = scmp.eq.s32.totalorder %s20, 0
    %p194 = por %p192, %p193
    %s195 = ssub.s32 %s14, %s21
    %p196 = scmp.eq.s32.totalorder %s195, 0
    %s198 = sadd.s32 %s197, 1
    %s199 = scalar_select %p196, %s197, %s198
    %p202 = pneg %p196
    %p203 = scmp.eq.s32.totalorder %s14, 1
    %p204 = por %p202, %p203
    %p205 = scmp.ne.s32.totalorder %s197, %s200
    %p206 = scmp.eq.s32.totalorder %s14, 0
    %p207 = por %p205, %p206
    %p208 = scmp.ne.s32.totalorder %s197, %s200
    %p209 = scmp.eq.s32.totalorder %s19, 1
    %p210 = por %p208, %p209
    %p211 = scmp.ne.s32.totalorder %s200, %s201
    %p212 = scmp.eq.s32.totalorder %s19, 0
    %p213 = por %p211, %p212
    %p214 = scmp.ne.s32.totalorder %s200, %s201
    %p215 = scmp.eq.s32.totalorder %s20, 1
    %p216 = por %p214, %p215
    %p218 = scmp.ne.s32.totalorder %s201, %s217
    %p219 = scmp.eq.s32.totalorder %s20, 0
    %p220 = por %p218, %p219
    %p221 = scmp.le.s32.totalorder 1, %s14
    %p222 = scmp.lt.s32.totalorder %s14, 3
    %p223 = pnand %p221, %p222
    %p224 = pneg %p223
    // Predicated region
    $region9: #{attention_block_pallas.1} parent=5 // pred_check
      _
    $region10: #{attention_block_pallas.1} parent=5 // pred_check_branch
      %226 = sbr.rel (%p223) target = $region12
    $region11: #{attention_block_pallas.1} parent=5 // pred_region
      %s227 = ssub.s32 %s14, 1
      // Predicated region
      $region13: #{attention_block_pallas.1} parent=11 // pred_check
        %p228 = pneg %p61
      $region14: #{attention_block_pallas.1} parent=11 // pred_check_branch
        %230 = sbr.rel (%p228) target = $region16
      $region15: #{attention_block_pallas.1} parent=11 // pred_region
        _
      $region16: #{attention_block_pallas.1} parent=11 // pred_fallthru
        _
      // Predicated region
      $region17: #{attention_block_pallas.1} parent=11 // pred_check
        %p231 = pneg %p82
      $region18: #{attention_block_pallas.1} parent=11 // pred_check_branch
        %233 = sbr.rel (%p231) target = $region20
      $region19: #{attention_block_pallas.1} parent=11 // pred_region
        _
      $region20: #{attention_block_pallas.1} parent=11 // pred_fallthru
        _
      // Predicated region
      $region21: #{attention_block_pallas.1} parent=11 // pred_check
        %p234 = pneg %p103
      $region22: #{attention_block_pallas.1} parent=11 // pred_check_branch
        %236 = sbr.rel (%p234) target = $region24
      $region23: #{attention_block_pallas.1} parent=11 // pred_region
        _
      $region24: #{attention_block_pallas.1} parent=11 // pred_fallthru
        _
      // Predicated region
      $region25: #{attention_block_pallas.1} parent=11 // pred_check
        %p237 = pneg %p124
      $region26: #{attention_block_pallas.1} parent=11 // pred_check_branch
        %239 = sbr.rel (%p237) target = $region28
      $region27: #{attention_block_pallas.1} parent=11 // pred_region
        _
      $region28: #{attention_block_pallas.1} parent=11 // pred_fallthru
        _
      // Predicated region
      $region29: #{attention_block_pallas.1} parent=11 // pred_check
        %p240 = pneg %p145
      $region30: #{attention_block_pallas.1} parent=11 // pred_check_branch
        %242 = sbr.rel (%p240) target = $region32
      $region31: #{attention_block_pallas.1} parent=11 // pred_region
        _
      $region32: #{attention_block_pallas.1} parent=11 // pred_fallthru
        _
      // Predicated region
      $region33: #{attention_block_pallas.1} parent=11 // pred_check
        %p243 = pneg %p166
      $region34: #{attention_block_pallas.1} parent=11 // pred_check_branch
        %245 = sbr.rel (%p243) target = $region36
      $region35: #{attention_block_pallas.1} parent=11 // pred_region
        _
      $region36: #{attention_block_pallas.1} parent=11 // pred_fallthru
        _
      // Predicated region
      $region37: #{attention_block_pallas.1} parent=11 // pred_check
        %p246 = pneg %p187
      $region38: #{attention_block_pallas.1} parent=11 // pred_check_branch
        %248 = sbr.rel (%p246) target = $region40
      $region39: #{attention_block_pallas.1} parent=11 // pred_region
        _
      $region40: #{attention_block_pallas.1} parent=11 // pred_fallthru
        _
    $region12: #{attention_block_pallas.1} parent=5 // pred_fallthru
      _
    %p249 = scmp.lt.s32.totalorder %s14, 2
    // Predicated region
    $region41: #{attention_block_pallas.1} parent=5 // pred_check
      %p250 = pneg %p249
    $region42: #{attention_block_pallas.1} parent=5 // pred_check_branch
      %252 = sbr.rel (%p250) target = $region44
    $region43: #{attention_block_pallas.1} parent=5 // pred_region
      // Predicated region
      $region45: #{attention_block_pallas.1} parent=43 // pred_check
        %p253 = pneg %p34
      $region46: #{attention_block_pallas.1} parent=43 // pred_check_branch
        %255 = sbr.rel (%p253) target = $region48
      $region47: #{attention_block_pallas.1} parent=43 // pred_region
        %p256 = scmp.lt.s32.totalorder %s14, 1
        %s257 = scalar_select %p256, %s14, 1
        %s258 = smul.addr %s257, 16
        %s259 = smul.addr %s258, 8
        %s260 = scalar_lea.vmem %s0, %s259
      $region48: #{attention_block_pallas.1} parent=43 // pred_fallthru
        _
    $region44: #{attention_block_pallas.1} parent=5 // pred_fallthru
      _
    %p261 = scmp.le.s32.totalorder 1, %s14
    %p262 = scmp.lt.s32.totalorder %s14, 3
    %p263 = pnand %p261, %p262
    %p264 = pneg %p263
    // Predicated region
    $region49: #{attention_block_pallas.1} parent=5 // pred_check
      _
    $region50: #{attention_block_pallas.1} parent=5 // pred_check_branch
      %266 = sbr.rel (%p263) target = $region52
    $region51: #{attention_block_pallas.1} parent=5 // pred_region
      %s267 = ssub.s32 %s14, 1
      %p268 = scmp.lt.s32.totalorder %s19, 1
      %s269 = scalar_select %p268, %s19, 1
      %s270 = smul.addr %s269, 16
      %s271 = smul.addr %s270, 8
      %s272 = scalar_lea.vmem %s0, %s271
      %p273 = pneg %p40
      %p274 = pneg %p37
      %p275 = pneg %p61
      %p276 = pneg %p58
      %p277 = pneg %p82
      %p278 = pneg %p79
      %p279 = pneg %p103
      %p280 = pneg %p100
      %p281 = pneg %p124
      %p282 = pneg %p121
      %p283 = pneg %p145
      %p284 = pneg %p142
      %p285 = pneg %p166
      %p286 = pneg %p163
      %p287 = pneg %p187
      %p288 = pneg %p184
      %p289 = pneg %p213
      %p290 = pneg %p210
      %p291 = scmp.lt.s32.totalorder %s19, 1
      %s292 = scalar_select %p291, %s19, 1
      %s293 = smul.addr %s292, 16
      %s294 = smul.addr %s293, 8
      %s295 = scalar_lea.vmem %s8, %s294
      %p296 = scmp.lt.s32.totalorder %s19, 1
      %s297 = scalar_select %p296, %s19, 1
      %s298 = smul.addr %s297, 16
      %s299 = smul.addr %s298, 8
      %s300 = scalar_lea.vmem %s0, %s299
      %p301 = scmp.lt.s32.totalorder %s19, 1
      %s302 = scalar_select %p301, %s19, 1
      %s303 = smul.addr %s302, 16
      %s304 = smul.addr %s303, 8
      %s305 = scalar_lea.vmem %s8, %s304
      %v307 = vld [vmem:[%s300] sm:$0xff]
      %v308 = vld [vmem:[%s300 + $0x8] sm:$0xff]
      %v309 = vld [vmem:[%s300 + $0x10] sm:$0xff]
      %v310 = vld [vmem:[%s300 + $0x18] sm:$0xff]
      %v311 = vld [vmem:[%s300 + $0x20] sm:$0xff]
      %v312 = vld [vmem:[%s300 + $0x28] sm:$0xff]
      %v313 = vld [vmem:[%s300 + $0x30] sm:$0xff]
      %v314 = vld [vmem:[%s300 + $0x38] sm:$0xff]
      %v315 = vld [vmem:[%s300 + $0x40] sm:$0xff]
      %v316 = vld [vmem:[%s300 + $0x48] sm:$0xff]
      %v317 = vld [vmem:[%s300 + $0x50] sm:$0xff]
      %v318 = vld [vmem:[%s300 + $0x58] sm:$0xff]
      %v319 = vld [vmem:[%s300 + $0x60] sm:$0xff]
      %v320 = vld [vmem:[%s300 + $0x68] sm:$0xff]
      %v321 = vld [vmem:[%s300 + $0x70] sm:$0xff]
      %v322 = vld [vmem:[%s300 + $0x78] sm:$0xff]
      %v323 = vadd.f32 %v307, %v308
      %324 = vadd.xlane.f32.xlu0 %v323
      %v325 = vpop.xlane.xlu0 %324
      %v326 = vadd.f32 %v309, %v310
      %327 = vadd.xlane.f32.xlu0 %v326
      %v328 = vpop.xlane.xlu0 %327
      %v329 = vadd.f32 %v311, %v312
      %330 = vadd.xlane.f32.xlu0 %v329
      %v331 = vpop.xlane.xlu0 %330
      %v332 = vadd.f32 %v313, %v314
      %333 = vadd.xlane.f32.xlu0 %v332
      %v334 = vpop.xlane.xlu0 %333
      %v335 = vadd.f32 %v315, %v316
      %336 = vadd.xlane.f32.xlu0 %v335
      %v337 = vpop.xlane.xlu0 %336
      %v338 = vadd.f32 %v317, %v318
      %339 = vadd.xlane.f32.xlu0 %v338
      %v340 = vpop.xlane.xlu0 %339
      %v341 = vadd.f32 %v319, %v320
      %342 = vadd.xlane.f32.xlu0 %v341
      %v343 = vpop.xlane.xlu0 %342
      %v344 = vadd.f32 %v321, %v322
      %345 = vadd.xlane.f32.xlu0 %v344
      %v346 = vpop.xlane.xlu0 %345
      %v347 = vld [vmem:[%s1] sm:$0xff]
      %v348 = vld [vmem:[%s1 + $0x8] sm:$0xff]
      %v349 = vld [vmem:[%s1 + $0x10] sm:$0xff]
      %v350 = vld [vmem:[%s1 + $0x18] sm:$0xff]
      %v351 = vld [vmem:[%s1 + $0x20] sm:$0xff]
      %v352 = vld [vmem:[%s1 + $0x28] sm:$0xff]
      %v353 = vld [vmem:[%s1 + $0x30] sm:$0xff]
      %v354 = vld [vmem:[%s1 + $0x38] sm:$0xff]
      %vm355 = vcmask 523264
      %v357 = vsel %vm355, %v347, 0
      %v360 = vsel %vm355, %v348, 0
      %v363 = vsel %vm355, %v349, 0
      %v366 = vsel %vm355, %v350, 0
      %v369 = vsel %vm355, %v351, 0
      %v372 = vsel %vm355, %v352, 0
      %v375 = vsel %vm355, %v353, 0
      %v378 = vsel %vm355, %v354, 0
      %380 = vmatprep.subr.mxu0 0.0
      %381 = vmatpush1.msra.mxu0 %v325
      %382 = vmatprep.subr.mxu0 0.0
      %383 = vmatpush1.msra.mxu0 %v328
      %384 = vmatprep.subr.mxu0 0.0
      %385 = vmatpush1.msra.mxu0 %v331
      %386 = vmatprep.subr.mxu0 0.0
      %387 = vmatpush1.msra.mxu0 %v334
      %388 = vmatprep.subr.mxu0 0.0
      %389 = vmatpush1.msra.mxu0 %v337
      %390 = vmatprep.subr.mxu0 0.0
      %391 = vmatpush1.msra.mxu0 %v340
      %392 = vmatprep.subr.mxu0 0.0
      %393 = vmatpush1.msra.mxu0 %v343
      %394 = vmatprep.subr.mxu0 0.0
      %395 = vmatpush1.msra.mxu0 %v346
      %396 = vmatprep.subr.mxu0 0.0
      %397 = vmatpush1.msra.mxu0 0.0
      %398 = vmatprep.subr.mxu0 0.0
      %399 = vmatpush1.msra.mxu0 0.0
      %400 = vmatprep.subr.mxu0 0.0
      %401 = vmatpush1.msra.mxu0 0.0
      %402 = vmatprep.subr.mxu0 0.0
      %403 = vmatpush1.msra.mxu0 0.0
      %404 = vmatprep.subr.mxu0 0.0
      %405 = vmatpush1.msra.mxu0 0.0
      %406 = vmatprep.subr.mxu0 0.0
      %407 = vmatpush1.msra.mxu0 0.0
      %408 = vmatprep.subr.mxu0 0.0
      %409 = vmatpush1.msra.mxu0 0.0
      %410 = vmatprep.subr.mxu0 0.0
      %411 = vmatpush1.msra.mxu0 0.0
      %412 = vmatprep.subr.mxu0 0.0
      %413 = vmatpush1.msra.mxu0 0.0
      %414 = vmatprep.subr.mxu0 0.0
      %415 = vmatpush1.msra.mxu0 0.0
      %416 = vmatprep.subr.mxu0 0.0
      %417 = vmatpush1.msra.mxu0 0.0
      %418 = vmatprep.subr.mxu0 0.0
      %419 = vmatpush1.msra.mxu0 0.0
      %420 = vmatprep.subr.mxu0 0.0
      %421 = vmatpush1.msra.mxu0 0.0
      %422 = vmatprep.subr.mxu0 0.0
      %423 = vmatpush1.msra.mxu0 0.0
      %424 = vmatprep.subr.mxu0 0.0
      %425 = vmatpush1.msra.mxu0 0.0
      %426 = vmatprep.subr.mxu0 0.0
      %427 = vmatpush1.msra.mxu0 0.0
      %428 = vmatprep.subr.mxu0 0.0
      %429 = vmatpush1.msra.mxu0 0.0
      %430 = vmatprep.subr.mxu0 0.0
      %431 = vmatpush1.msra.mxu0 0.0
      %432 = vmatprep.subr.mxu0 0.0
      %433 = vmatpush1.msra.mxu0 0.0
      %434 = vmatprep.subr.mxu0 0.0
      %435 = vmatpush1.msra.mxu0 0.0
      %436 = vmatprep.subr.mxu0 0.0
      %437 = vmatpush1.msra.mxu0 0.0
      %438 = vmatprep.subr.mxu0 0.0
      %439 = vmatpush1.msra.mxu0 0.0
      %440 = vmatprep.subr.mxu0 0.0
      %441 = vmatpush1.msra.mxu0 0.0
      %442 = vmatprep.subr.mxu0 0.0
      %443 = vmatpush1.msra.mxu0 0.0
      %444 = vmatprep.mubr.f32.mxu0 0.0
      %445 = vmatmul.mubr.f32.gmra.mrb[0].mxu0 %v357
      %v446 = vpop.f32.mrb[0].mxu0
      %v447 = vadd.f32 0.0, %v446
      %v448 = vpop.f32.mrb[0].mxu0
      %449 = vmatprep.mubr.f32.mxu0 0.0
      %450 = vmatmul.mubr.f32.gmra.mrb[0].mxu0 %v360
      %v451 = vpop.f32.mrb[0].mxu0
      %v452 = vadd.f32 0.0, %v451
      %v453 = vpop.f32.mrb[0].mxu0
      %454 = vmatprep.mubr.f32.mxu0 0.0
      %455 = vmatmul.mubr.f32.gmra.mrb[0].mxu0 %v363
      %v456 = vpop.f32.mrb[0].mxu0
      %v457 = vadd.f32 0.0, %v456
      %v458 = vpop.f32.mrb[0].mxu0
      %459 = vmatprep.mubr.f32.mxu0 0.0
      %460 = vmatmul.mubr.f32.gmra.mrb[0].mxu0 %v366
      %v461 = vpop.f32.mrb[0].mxu0
      %v462 = vadd.f32 0.0, %v461
      %v463 = vpop.f32.mrb[0].mxu0
      %464 = vmatprep.mubr.f32.mxu0 0.0
      %465 = vmatmul.mubr.f32.gmra.mrb[0].mxu0 %v369
      %v466 = vpop.f32.mrb[0].mxu0
      %v467 = vadd.f32 0.0, %v466
      %v468 = vpop.f32.mrb[0].mxu0
      %469 = vmatprep.mubr.f32.mxu0 0.0
      %470 = vmatmul.mubr.f32.gmra.mrb[0].mxu0 %v372
      %v471 = vpop.f32.mrb[0].mxu0
      %v472 = vadd.f32 0.0, %v471
      %v473 = vpop.f32.mrb[0].mxu0
      %474 = vmatprep.mubr.f32.mxu0 0.0
      %475 = vmatmul.mubr.f32.gmra.mrb[0].mxu0 %v375
      %v476 = vpop.f32.mrb[0].mxu0
      %v477 = vadd.f32 0.0, %v476
      %v478 = vpop.f32.mrb[0].mxu0
      %479 = vmatprep.mubr.f32.mxu0 0.0
      %480 = vmatmul.mubr.f32.gmra.mrb[0].mxu0 %v378
      %v481 = vpop.f32.mrb[0].mxu0
      %v482 = vadd.f32 0.0, %v481
      %v483 = vpop.f32.mrb[0].mxu0
      %484 = vdwg.mxu0
      %486 = vset.pattern.permute.xlu0 0
      %487 = vperm.xlu0 %486, %v447
      %v488 = vpop.permute.xlu0 %487
      %491 = vset.pattern.permute.xlu0 0
      %492 = vperm.xlu0 %491, %v452
      %v493 = vpop.permute.xlu0 %492
      %496 = vset.pattern.permute.xlu0 0
      %497 = vperm.xlu0 %496, %v457
      %v498 = vpop.permute.xlu0 %497
      %501 = vset.pattern.permute.xlu0 0
      %502 = vperm.xlu0 %501, %v462
      %v503 = vpop.permute.xlu0 %502
      %506 = vset.pattern.permute.xlu0 0
      %507 = vperm.xlu0 %506, %v467
      %v508 = vpop.permute.xlu0 %507
      %511 = vset.pattern.permute.xlu0 0
      %512 = vperm.xlu0 %511, %v472
      %v513 = vpop.permute.xlu0 %512
      %516 = vset.pattern.permute.xlu0 0
      %517 = vperm.xlu0 %516, %v477
      %v518 = vpop.permute.xlu0 %517
      %521 = vset.pattern.permute.xlu0 0
      %522 = vperm.xlu0 %521, %v482
      %v523 = vpop.permute.xlu0 %522
      %v525 = vsub.f32 %v307, %v488
      %v526 = vsub.f32 %v308, %v488
      %v527 = vsub.f32 %v309, %v493
      %v528 = vsub.f32 %v310, %v493
      %v529 = vsub.f32 %v311, %v498
      %v530 = vsub.f32 %v312, %v498
      %v531 = vsub.f32 %v313, %v503
      %v532 = vsub.f32 %v314, %v503
      %v533 = vsub.f32 %v315, %v508
      %v534 = vsub.f32 %v316, %v508
      %v535 = vsub.f32 %v317, %v513
      %v536 = vsub.f32 %v318, %v513
      %v537 = vsub.f32 %v319, %v518
      %v538 = vsub.f32 %v320, %v518
      %v539 = vsub.f32 %v321, %v523
      %v540 = vsub.f32 %v322, %v523
      %v541 = vmul.f32 %v525, %v525
      %v542 = vmul.f32 %v526, %v526
      %v543 = vmul.f32 %v527, %v527
      %v544 = vmul.f32 %v528, %v528
      %v545 = vmul.f32 %v529, %v529
      %v546 = vmul.f32 %v530, %v530
      %v547 = vmul.f32 %v531, %v531
      %v548 = vmul.f32 %v532, %v532
      %v549 = vmul.f32 %v533, %v533
      %v550 = vmul.f32 %v534, %v534
      %v551 = vmul.f32 %v535, %v535
      %v552 = vmul.f32 %v536, %v536
      %v553 = vmul.f32 %v537, %v537
      %v554 = vmul.f32 %v538, %v538
      %v555 = vmul.f32 %v539, %v539
      %v556 = vmul.f32 %v540, %v540
      %v557 = vadd.f32 %v541, %v542
      %558 = vadd.xlane.f32.xlu0 %v557
      %v559 = vpop.xlane.xlu0 %558
      %v560 = vadd.f32 %v543, %v544
      %561 = vadd.xlane.f32.xlu0 %v560
      %v562 = vpop.xlane.xlu0 %561
      %v563 = vadd.f32 %v545, %v546
      %564 = vadd.xlane.f32.xlu0 %v563
      %v565 = vpop.xlane.xlu0 %564
      %v566 = vadd.f32 %v547, %v548
      %567 = vadd.xlane.f32.xlu0 %v566
      %v568 = vpop.xlane.xlu0 %567
      %v569 = vadd.f32 %v549, %v550
      %570 = vadd.xlane.f32.xlu0 %v569
      %v571 = vpop.xlane.xlu0 %570
      %v572 = vadd.f32 %v551, %v552
      %573 = vadd.xlane.f32.xlu0 %v572
      %v574 = vpop.xlane.xlu0 %573
      %v575 = vadd.f32 %v553, %v554
      %576 = vadd.xlane.f32.xlu0 %v575
      %v577 = vpop.xlane.xlu0 %576
      %v578 = vadd.f32 %v555, %v556
      %579 = vadd.xlane.f32.xlu0 %v578
      %v580 = vpop.xlane.xlu0 %579
      %581 = vmatprep.subr.mxu0 0.0
      %582 = vmatpush1.msra.mxu0 %v559
      %583 = vmatprep.subr.mxu0 0.0
      %584 = vmatpush1.msra.mxu0 %v562
      %585 = vmatprep.subr.mxu0 0.0
      %586 = vmatpush1.msra.mxu0 %v565
      %587 = vmatprep.subr.mxu0 0.0
      %588 = vmatpush1.msra.mxu0 %v568
      %589 = vmatprep.subr.mxu0 0.0
      %590 = vmatpush1.msra.mxu0 %v571
      %591 = vmatprep.subr.mxu0 0.0
      %592 = vmatpush1.msra.mxu0 %v574
      %593 = vmatprep.subr.mxu0 0.0
      %594 = vmatpush1.msra.mxu0 %v577
      %595 = vmatprep.subr.mxu0 0.0
      %596 = vmatpush1.msra.mxu0 %v580
      %597 = vmatprep.subr.mxu0 0.0
      %598 = vmatpush1.msra.mxu0 0.0
      %599 = vmatprep.subr.mxu0 0.0
      %600 = vmatpush1.msra.mxu0 0.0
      %601 = vmatprep.subr.mxu0 0.0
      %602 = vmatpush1.msra.mxu0 0.0
      %603 = vmatprep.subr.mxu0 0.0
      %604 = vmatpush1.msra.mxu0 0.0
      %605 = vmatprep.subr.mxu0 0.0
      %606 = vmatpush1.msra.mxu0 0.0
      %607 = vmatprep.subr.mxu0 0.0
      %608 = vmatpush1.msra.mxu0 0.0
      %609 = vmatprep.subr.mxu0 0.0
      %610 = vmatpush1.msra.mxu0 0.0
      %611 = vmatprep.subr.mxu0 0.0
      %612 = vmatpush1.msra.mxu0 0.0
      %613 = vmatprep.subr.mxu0 0.0
      %614 = vmatpush1.msra.mxu0 0.0
      %615 = vmatprep.subr.mxu0 0.0
      %616 = vmatpush1.msra.mxu0 0.0
      %617 = vmatprep.subr.mxu0 0.0
      %618 = vmatpush1.msra.mxu0 0.0
      %619 = vmatprep.subr.mxu0 0.0
      %620 = vmatpush1.msra.mxu0 0.0
      %621 = vmatprep.subr.mxu0 0.0
      %622 = vmatpush1.msra.mxu0 0.0
      %623 = vmatprep.subr.mxu0 0.0
      %624 = vmatpush1.msra.mxu0 0.0
      %625 = vmatprep.subr.mxu0 0.0
      %626 = vmatpush1.msra.mxu0 0.0
      %627 = vmatprep.subr.mxu0 0.0
      %628 = vmatpush1.msra.mxu0 0.0
      %629 = vmatprep.subr.mxu0 0.0
      %630 = vmatpush1.msra.mxu0 0.0
      %631 = vmatprep.subr.mxu0 0.0
      %632 = vmatpush1.msra.mxu0 0.0
      %633 = vmatprep.subr.mxu0 0.0
      %634 = vmatpush1.msra.mxu0 0.0
      %635 = vmatprep.subr.mxu0 0.0
      %636 = vmatpush1.msra.mxu0 0.0
      %637 = vmatprep.subr.mxu0 0.0
      %638 = vmatpush1.msra.mxu0 0.0
      %639 = vmatprep.subr.mxu0 0.0
      %640 = vmatpush1.msra.mxu0 0.0
      %641 = vmatprep.subr.mxu0 0.0
      %642 = vmatpush1.msra.mxu0 0.0
      %643 = vmatprep.subr.mxu0 0.0
      %644 = vmatpush1.msra.mxu0 0.0
      %645 = vmatprep.mubr.f32.mxu0 0.0
      %646 = vmatmul.mubr.f32.gmra.mrb[0].mxu0 %v357
      %v647 = vpop.f32.mrb[0].mxu0
      %v648 = vadd.f32 1e-05, %v647
      %v649 = vpop.f32.mrb[0].mxu0
      %650 = vmatprep.mubr.f32.mxu0 0.0
      %651 = vmatmul.mubr.f32.gmra.mrb[0].mxu0 %v360
      %v652 = vpop.f32.mrb[0].mxu0
      %v653 = vadd.f32 1e-05, %v652
      %v654 = vpop.f32.mrb[0].mxu0
      %655 = vmatprep.mubr.f32.mxu0 0.0
      %656 = vmatmul.mubr.f32.gmra.mrb[0].mxu0 %v363
      %v657 = vpop.f32.mrb[0].mxu0
      %v658 = vadd.f32 1e-05, %v657
      %v659 = vpop.f32.mrb[0].mxu0
      %660 = vmatprep.mubr.f32.mxu0 0.0
      %661 = vmatmul.mubr.f32.gmra.mrb[0].mxu0 %v366
      %v662 = vpop.f32.mrb[0].mxu0
      %v663 = vadd.f32 1e-05, %v662
      %v664 = vpop.f32.mrb[0].mxu0
      %665 = vmatprep.mubr.f32.mxu0 0.0
      %666 = vmatmul.mubr.f32.gmra.mrb[0].mxu0 %v369
      %v667 = vpop.f32.mrb[0].mxu0
      %v668 = vadd.f32 1e-05, %v667
      %v669 = vpop.f32.mrb[0].mxu0
      %670 = vmatprep.mubr.f32.mxu0 0.0
      %671 = vmatmul.mubr.f32.gmra.mrb[0].mxu0 %v372
      %v672 = vpop.f32.mrb[0].mxu0
      %v673 = vadd.f32 1e-05, %v672
      %v674 = vpop.f32.mrb[0].mxu0
      %675 = vmatprep.mubr.f32.mxu0 0.0
      %676 = vmatmul.mubr.f32.gmra.mrb[0].mxu0 %v375
      %v677 = vpop.f32.mrb[0].mxu0
      %v678 = vadd.f32 1e-05, %v677
      %v679 = vpop.f32.mrb[0].mxu0
      %680 = vmatprep.mubr.f32.mxu0 0.0
      %681 = vmatmul.mubr.f32.gmra.mrb[0].mxu0 %v378
      %v682 = vpop.f32.mrb[0].mxu0
      %v683 = vadd.f32 1e-05, %v682
      %v684 = vpop.f32.mrb[0].mxu0
      %685 = vdwg.mxu0
      %v686 = vrsqrt.pop %v648
      %v687 = vrsqrt.pop %v653
      %v688 = vrsqrt.pop %v658
      %v689 = vrsqrt.pop %v663
      %v690 = vrsqrt.pop %v668
      %v691 = vrsqrt.pop %v673
      %v692 = vrsqrt.pop %v678
      %v693 = vrsqrt.pop %v683
      %695 = vset.pattern.permute.xlu0 0
      %696 = vperm.xlu0 %695, %v686
      %v697 = vpop.permute.xlu0 %696
      %700 = vset.pattern.permute.xlu0 0
      %701 = vperm.xlu0 %700, %v687
      %v702 = vpop.permute.xlu0 %701
      %705 = vset.pattern.permute.xlu0 0
      %706 = vperm.xlu0 %705, %v688
      %v707 = vpop.permute.xlu0 %706
      %710 = vset.pattern.permute.xlu0 0
      %711 = vperm.xlu0 %710, %v689
      %v712 = vpop.permute.xlu0 %711
      %715 = vset.pattern.permute.xlu0 0
      %716 = vperm.xlu0 %715, %v690
      %v717 = vpop.permute.xlu0 %716
      %720 = vset.pattern.permute.xlu0 0
      %721 = vperm.xlu0 %720, %v691
      %v722 = vpop.permute.xlu0 %721
      %725 = vset.pattern.permute.xlu0 0
      %726 = vperm.xlu0 %725, %v692
      %v727 = vpop.permute.xlu0 %726
      %730 = vset.pattern.permute.xlu0 0
      %731 = vperm.xlu0 %730, %v693
      %v732 = vpop.permute.xlu0 %731
      %v734 = vmul.f32 %v525, %v697
      %v735 = vmul.f32 %v526, %v697
      %v736 = vmul.f32 %v527, %v702
      %v737 = vmul.f32 %v528, %v702
      %v738 = vmul.f32 %v529, %v707
      %v739 = vmul.f32 %v530, %v707
      %v740 = vmul.f32 %v531, %v712
      %v741 = vmul.f32 %v532, %v712
      %v742 = vmul.f32 %v533, %v717
      %v743 = vmul.f32 %v534, %v717
      %v744 = vmul.f32 %v535, %v722
      %v745 = vmul.f32 %v536, %v722
      %v746 = vmul.f32 %v537, %v727
      %v747 = vmul.f32 %v538, %v727
      %v748 = vmul.f32 %v539, %v732
      %v749 = vmul.f32 %v540, %v732
      %v750 = vld [vmem:[%s2] sm:$0xff]
      %v751 = vld [vmem:[%s2 + $0x8] sm:$0xff]
      %v752 = vld [vmem:[%s2 + $0x10] sm:$0xff]
      %v753 = vld [vmem:[%s2 + $0x18] sm:$0xff]
      %v754 = vld [vmem:[%s2 + $0x20] sm:$0xff]
      %v755 = vld [vmem:[%s2 + $0x28] sm:$0xff]
      %v756 = vld [vmem:[%s2 + $0x30] sm:$0xff]
      %v757 = vld [vmem:[%s2 + $0x38] sm:$0xff]
      %759 = vset.pattern.permute.xlu0 0
      %760 = vperm.xlu0 %759, %v750
      %v761 = vpop.permute.xlu0 %760
      %764 = vset.pattern.permute.xlu0 0
      %765 = vperm.xlu0 %764, %v751
      %v766 = vpop.permute.xlu0 %765
      %769 = vset.pattern.permute.xlu0 0
      %770 = vperm.xlu0 %769, %v752
      %v771 = vpop.permute.xlu0 %770
      %774 = vset.pattern.permute.xlu0 0
      %775 = vperm.xlu0 %774, %v753
      %v776 = vpop.permute.xlu0 %775
      %779 = vset.pattern.permute.xlu0 0
      %780 = vperm.xlu0 %779, %v754
      %v781 = vpop.permute.xlu0 %780
      %784 = vset.pattern.permute.xlu0 0
      %785 = vperm.xlu0 %784, %v755
      %v786 = vpop.permute.xlu0 %785
      %789 = vset.pattern.permute.xlu0 0
      %790 = vperm.xlu0 %789, %v756
      %v791 = vpop.permute.xlu0 %790
      %794 = vset.pattern.permute.xlu0 0
      %795 = vperm.xlu0 %794, %v757
      %v796 = vpop.permute.xlu0 %795
      %v798 = vmul.f32 %v734, %v761
      %v799 = vmul.f32 %v735, %v761
      %v800 = vmul.f32 %v736, %v766
      %v801 = vmul.f32 %v737, %v766
      %v802 = vmul.f32 %v738, %v771
      %v803 = vmul.f32 %v739, %v771
      %v804 = vmul.f32 %v740, %v776
      %v805 = vmul.f32 %v741, %v776
      %v806 = vmul.f32 %v742, %v781
      %v807 = vmul.f32 %v743, %v781
      %v808 = vmul.f32 %v744, %v786
      %v809 = vmul.f32 %v745, %v786
      %v810 = vmul.f32 %v746, %v791
      %v811 = vmul.f32 %v747, %v791
      %v812 = vmul.f32 %v748, %v796
      %v813 = vmul.f32 %v749, %v796
      %v814 = vld [vmem:[%s3] sm:$0xff]
      %v815 = vld [vmem:[%s3 + $0x8] sm:$0xff]
      %v816 = vld [vmem:[%s3 + $0x10] sm:$0xff]
      %v817 = vld [vmem:[%s3 + $0x18] sm:$0xff]
      %v818 = vld [vmem:[%s3 + $0x20] sm:$0xff]
      %v819 = vld [vmem:[%s3 + $0x28] sm:$0xff]
      %v820 = vld [vmem:[%s3 + $0x30] sm:$0xff]
      %v821 = vld [vmem:[%s3 + $0x38] sm:$0xff]
      %823 = vset.pattern.permute.xlu0 0
      %824 = vperm.xlu0 %823, %v814
      %v825 = vpop.permute.xlu0 %824
      %828 = vset.pattern.permute.xlu0 0
      %829 = vperm.xlu0 %828, %v815
      %v830 = vpop.permute.xlu0 %829
      %833 = vset.pattern.permute.xlu0 0
      %834 = vperm.xlu0 %833, %v816
      %v835 = vpop.permute.xlu0 %834
      %838 = vset.pattern.permute.xlu0 0
      %839 = vperm.xlu0 %838, %v817
      %v840 = vpop.permute.xlu0 %839
      %843 = vset.pattern.permute.xlu0 0
      %844 = vperm.xlu0 %843, %v818
      %v845 = vpop.permute.xlu0 %844
      %848 = vset.pattern.permute.xlu0 0
      %849 = vperm.xlu0 %848, %v819
      %v850 = vpop.permute.xlu0 %849
      %853 = vset.pattern.permute.xlu0 0
      %854 = vperm.xlu0 %853, %v820
      %v855 = vpop.permute.xlu0 %854
      %858 = vset.pattern.permute.xlu0 0
      %859 = vperm.xlu0 %858, %v821
      %v860 = vpop.permute.xlu0 %859
      %v862 = vadd.f32 %v798, %v825
      %v863 = vadd.f32 %v799, %v825
      %v864 = vadd.f32 %v800, %v830
      %v865 = vadd.f32 %v801, %v830
      %v866 = vadd.f32 %v802, %v835
      %v867 = vadd.f32 %v803, %v835
      %v868 = vadd.f32 %v804, %v840
      %v869 = vadd.f32 %v805, %v840
      %v870 = vadd.f32 %v806, %v845
      %v871 = vadd.f32 %v807, %v845
      %v872 = vadd.f32 %v808, %v850
      %v873 = vadd.f32 %v809, %v850
      %v874 = vadd.f32 %v810, %v855
      %v875 = vadd.f32 %v811, %v855
      %v876 = vadd.f32 %v812, %v860
      %v877 = vadd.f32 %v813, %v860
      %v878 = vld [vmem:[%s4] sm:$0xf]
      %v879 = vld [vmem:[%s4 + $0x4] sm:$0xf]
      %v880 = vld [vmem:[%s4 + $0x8] sm:$0xf]
      %v881 = vld [vmem:[%s4 + $0xc] sm:$0xf]
      %v882 = vld [vmem:[%s4 + $0x10] sm:$0xf]
      %v883 = vld [vmem:[%s4 + $0x14] sm:$0xf]
      %v884 = vld [vmem:[%s4 + $0x18] sm:$0xf]
      %v885 = vld [vmem:[%s4 + $0x1c] sm:$0xf]
      %v886 = vld [vmem:[%s4 + $0x20] sm:$0xf]
      %v887 = vld [vmem:[%s4 + $0x24] sm:$0xf]
      %v888 = vld [vmem:[%s4 + $0x28] sm:$0xf]
      %v889 = vld [vmem:[%s4 + $0x2c] sm:$0xf]
      %v890 = vld [vmem:[%s4 + $0x30] sm:$0xf]
      %v891 = vld [vmem:[%s4 + $0x34] sm:$0xf]
      %v892 = vld [vmem:[%s4 + $0x38] sm:$0xf]
      %v893 = vld [vmem:[%s4 + $0x3c] sm:$0xf]
      %v894 = vld [vmem:[%s4 + $0x40] sm:$0xf]
      %v895 = vld [vmem:[%s4 + $0x44] sm:$0xf]
      %v896 = vld [vmem:[%s4 + $0x48] sm:$0xf]
      %v897 = vld [vmem:[%s4 + $0x4c] sm:$0xf]
      %v898 = vld [vmem:[%s4 + $0x50] sm:$0xf]
      %v899 = vld [vmem:[%s4 + $0x54] sm:$0xf]
      %v900 = vld [vmem:[%s4 + $0x58] sm:$0xf]
      %v901 = vld [vmem:[%s4 + $0x5c] sm:$0xf]
      %v902 = vpack.c.bf16 %v864, %v862
      %v903 = vpack.c.bf16 %v865, %v863
      %v904 = vpack.c.bf16 %v868, %v866
      %v905 = vpack.c.bf16 %v869, %v867
      %v906 = vpack.c.bf16 %v872, %v870
      %v907 = vpack.c.bf16 %v873, %v871
      %v908 = vpack.c.bf16 %v876, %v874
      %v909 = vpack.c.bf16 %v877, %v875
      %v910 = vld [vmem:[%s5] sm:$0xff]
      %v911 = vld [vmem:[%s5 + $0x8] sm:$0xff]
      %v912 = vld [vmem:[%s5 + $0x10] sm:$0xff]
      %v913 = vld [vmem:[%s5 + $0x18] sm:$0xff]
      %v914 = vld [vmem:[%s5 + $0x20] sm:$0xff]
      %v915 = vld [vmem:[%s5 + $0x28] sm:$0xff]
      %v916 = vld [vmem:[%s5 + $0x30] sm:$0xff]
      %v917 = vld [vmem:[%s5 + $0x38] sm:$0xff]
      %v918 = vld [vmem:[%s5 + $0x40] sm:$0xff]
      %v919 = vld [vmem:[%s5 + $0x48] sm:$0xff]
      %v920 = vld [vmem:[%s5 + $0x50] sm:$0xff]
      %v921 = vld [vmem:[%s5 + $0x58] sm:$0xff]
      %v922 = vld [vmem:[%s5 + $0x60] sm:$0xff]
      %v923 = vld [vmem:[%s5 + $0x68] sm:$0xff]
      %v924 = vld [vmem:[%s5 + $0x70] sm:$0xff]
      %v925 = vld [vmem:[%s5 + $0x78] sm:$0xff]
      %v926 = vld [vmem:[%s5 + $0x80] sm:$0xff]
      %v927 = vld [vmem:[%s5 + $0x88] sm:$0xff]
      %v928 = vld [vmem:[%s5 + $0x90] sm:$0xff]
      %v929 = vld [vmem:[%s5 + $0x98] sm:$0xff]
      %v930 = vld [vmem:[%s5 + $0xa0] sm:$0xff]
      %v931 = vld [vmem:[%s5 + $0xa8] sm:$0xff]
      %v932 = vld [vmem:[%s5 + $0xb0] sm:$0xff]
      %v933 = vld [vmem:[%s5 + $0xb8] sm:$0xff]
      %935 = vset.pattern.permute.xlu0 0
      %936 = vperm.xlu0 %935, %v910
      %v937 = vpop.permute.xlu0 %936
      %940 = vset.pattern.permute.xlu0 0
      %941 = vperm.xlu0 %940, %v911
      %v942 = vpop.permute.xlu0 %941
      %945 = vset.pattern.permute.xlu0 0
      %946 = vperm.xlu0 %945, %v912
      %v947 = vpop.permute.xlu0 %946
      %950 = vset.pattern.permute.xlu0 0
      %951 = vperm.xlu0 %950, %v913
      %v952 = vpop.permute.xlu0 %951
      %955 = vset.pattern.permute.xlu0 0
      %956 = vperm.xlu0 %955, %v914
      %v957 = vpop.permute.xlu0 %956
      %960 = vset.pattern.permute.xlu0 0
      %961 = vperm.xlu0 %960, %v915
      %v962 = vpop.permute.xlu0 %961
      %965 = vset.pattern.permute.xlu0 0
      %966 = vperm.xlu0 %965, %v916
      %v967 = vpop.permute.xlu0 %966
      %970 = vset.pattern.permute.xlu0 0
      %971 = vperm.xlu0 %970, %v917
      %v972 = vpop.permute.xlu0 %971
      %975 = vset.pattern.permute.xlu0 0
      %976 = vperm.xlu0 %975, %v918
      %v977 = vpop.permute.xlu0 %976
      %980 = vset.pattern.permute.xlu0 0
      %981 = vperm.xlu0 %980, %v919
      %v982 = vpop.permute.xlu0 %981
      %985 = vset.pattern.permute.xlu0 0
      %986 = vperm.xlu0 %985, %v920
      %v987 = vpop.permute.xlu0 %986
      %990 = vset.pattern.permute.xlu0 0
      %991 = vperm.xlu0 %990, %v921
      %v992 = vpop.permute.xlu0 %991
      %995 = vset.pattern.permute.xlu0 0
      %996 = vperm.xlu0 %995, %v922
      %v997 = vpop.permute.xlu0 %996
      %1000 = vset.pattern.permute.xlu0 0
      %1001 = vperm.xlu0 %1000, %v923
      %v1002 = vpop.permute.xlu0 %1001
      %1005 = vset.pattern.permute.xlu0 0
      %1006 = vperm.xlu0 %1005, %v924
      %v1007 = vpop.permute.xlu0 %1006
      %1010 = vset.pattern.permute.xlu0 0
      %1011 = vperm.xlu0 %1010, %v925
      %v1012 = vpop.permute.xlu0 %1011
      %1015 = vset.pattern.permute.xlu0 0
      %1016 = vperm.xlu0 %1015, %v926
      %v1017 = vpop.permute.xlu0 %1016
      %1020 = vset.pattern.permute.xlu0 0
      %1021 = vperm.xlu0 %1020, %v927
      %v1022 = vpop.permute.xlu0 %1021
      %1025 = vset.pattern.permute.xlu0 0
      %1026 = vperm.xlu0 %1025, %v928
      %v1027 = vpop.permute.xlu0 %1026
      %1030 = vset.pattern.permute.xlu0 0
      %1031 = vperm.xlu0 %1030, %v929
      %v1032 = vpop.permute.xlu0 %1031
      %1035 = vset.pattern.permute.xlu0 0
      %1036 = vperm.xlu0 %1035, %v930
      %v1037 = vpop.permute.xlu0 %1036
      %1040 = vset.pattern.permute.xlu0 0
      %1041 = vperm.xlu0 %1040, %v931
      %v1042 = vpop.permute.xlu0 %1041
      %1045 = vset.pattern.permute.xlu0 0
      %1046 = vperm.xlu0 %1045, %v932
      %v1047 = vpop.permute.xlu0 %1046
      %1050 = vset.pattern.permute.xlu0 0
      %1051 = vperm.xlu0 %1050, %v933
      %v1052 = vpop.permute.xlu0 %1051
      %v1078 = vunpack.c.l.b16 %v878
      %v1079 = vunpack.c.l.b16 %v879
      %v1080 = vunpack.c.l.b16 %v880
      %v1081 = vunpack.c.l.b16 %v881
      %v1082 = vunpack.c.l.b16 %v882
      %v1083 = vunpack.c.l.b16 %v883
      %v1084 = vunpack.c.l.b16 %v884
      %v1085 = vunpack.c.l.b16 %v885
      %v1086 = vunpack.c.l.b16 %v886
      %v1087 = vunpack.c.l.b16 %v887
      %v1088 = vunpack.c.l.b16 %v888
      %v1089 = vunpack.c.l.b16 %v889
      %v1090 = vunpack.c.l.b16 %v890
      %v1091 = vunpack.c.l.b16 %v891
      %v1092 = vunpack.c.l.b16 %v892
      %v1093 = vunpack.c.l.b16 %v893
      %v1094 = vunpack.c.l.b16 %v894
      %v1095 = vunpack.c.l.b16 %v895
      %v1096 = vunpack.c.l.b16 %v896
      %v1097 = vunpack.c.l.b16 %v897
      %v1098 = vunpack.c.l.b16 %v898
      %v1099 = vunpack.c.l.b16 %v899
      %v1100 = vunpack.c.l.b16 %v900
      %v1101 = vunpack.c.l.b16 %v901
      %v1102 = vpack.c.b16 %v1079, %v1078
      %v1103 = vpack.c.b16 %v1081, %v1080
      %v1104 = vpack.c.b16 %v1083, %v1082
      %v1105 = vpack.c.b16 %v1085, %v1084
      %v1106 = vpack.c.b16 %v1087, %v1086
      %v1107 = vpack.c.b16 %v1089, %v1088
      %v1108 = vpack.c.b16 %v1091, %v1090
      %v1109 = vpack.c.b16 %v1093, %v1092
      %v1110 = vpack.c.b16 %v1095, %v1094
      %v1111 = vpack.c.b16 %v1097, %v1096
      %v1112 = vpack.c.b16 %v1099, %v1098
      %v1113 = vpack.c.b16 %v1101, %v1100
      %v1115 = vsel %vm355, %v1102, 0
      %v1118 = vsel %vm355, %v1103, 0
      %v1121 = vsel %vm355, %v1104, 0
      %v1124 = vsel %vm355, %v1105, 0
      %v1127 = vsel %vm355, %v1106, 0
      %v1130 = vsel %vm355, %v1107, 0
      %v1133 = vsel %vm355, %v1108, 0
      %v1136 = vsel %vm355, %v1109, 0
      %v1139 = vsel %vm355, %v1110, 0
      %v1142 = vsel %vm355, %v1111, 0
      %v1145 = vsel %vm355, %v1112, 0
      %v1148 = vsel %vm355, %v1113, 0
      %1150 = vmatprep.subr.bf16.mxu0 %v903
      %1151 = vmatpush1.bf16.msra.mxu0 %v902
      %1152 = vmatprep.subr.bf16.mxu0 %v905
      %1153 = vmatpush1.bf16.msra.mxu0 %v904
      %1154 = vmatprep.subr.bf16.mxu0 %v907
      %1155 = vmatpush1.bf16.msra.mxu0 %v906
      %1156 = vmatprep.subr.bf16.mxu0 %v909
      %1157 = vmatpush1.bf16.msra.mxu0 %v908
      %1158 = vmatprep.subr.bf16.mxu0 0
      %1159 = vmatpush1.bf16.msra.mxu0 0
      %1160 = vmatprep.subr.bf16.mxu0 0
      %1161 = vmatpush1.bf16.msra.mxu0 0
      %1162 = vmatprep.subr.bf16.mxu0 0
      %1163 = vmatpush1.bf16.msra.mxu0 0
      %1164 = vmatprep.subr.bf16.mxu0 0
      %1165 = vmatpush1.bf16.msra.mxu0 0
      %1166 = vmatprep.subr.bf16.mxu0 0
      %1167 = vmatpush1.bf16.msra.mxu0 0
      %1168 = vmatprep.subr.bf16.mxu0 0
      %1169 = vmatpush1.bf16.msra.mxu0 0
      %1170 = vmatprep.subr.bf16.mxu0 0
      %1171 = vmatpush1.bf16.msra.mxu0 0
      %1172 = vmatprep.subr.bf16.mxu0 0
      %1173 = vmatpush1.bf16.msra.mxu0 0
      %1174 = vmatprep.subr.bf16.mxu0 0
      %1175 = vmatpush1.bf16.msra.mxu0 0
      %1176 = vmatprep.subr.bf16.mxu0 0
      %1177 = vmatpush1.bf16.msra.mxu0 0
      %1178 = vmatprep.subr.bf16.mxu0 0
      %1179 = vmatpush1.bf16.msra.mxu0 0
      %1180 = vmatprep.subr.bf16.mxu0 0
      %1181 = vmatpush1.bf16.msra.mxu0 0
      %1182 = vmatprep.mubr.bf16.mxu0 0
      %1183 = vmatmul.mubr.bf16.gmra.mrb[0].mxu0 %v1115
      %v1184 = vpop.f32.mrb[0].mxu0
      %v1185 = vadd.f32 %v937, %v1184
      %v1186 = vpop.f32.mrb[0].mxu0
      %v1187 = vadd.f32 %v937, %v1186
      %v1188 = vpop.f32.mrb[0].mxu0
      %v1189 = vadd.f32 %v942, %v1188
      %v1190 = vpop.f32.mrb[0].mxu0
      %v1191 = vadd.f32 %v942, %v1190
      %1192 = vmatprep.mubr.bf16.mxu0 0
      %1193 = vmatmul.mubr.bf16.gmra.mrb[0].mxu0 %v1118
      %v1194 = vpop.f32.mrb[0].mxu0
      %v1195 = vadd.f32 %v947, %v1194
      %v1196 = vpop.f32.mrb[0].mxu0
      %v1197 = vadd.f32 %v947, %v1196
      %v1198 = vpop.f32.mrb[0].mxu0
      %v1199 = vadd.f32 %v952, %v1198
      %v1200 = vpop.f32.mrb[0].mxu0
      %v1201 = vadd.f32 %v952, %v1200
      %1202 = vmatprep.mubr.bf16.mxu0 0
      %1203 = vmatmul.mubr.bf16.gmra.mrb[0].mxu0 %v1121
      %v1204 = vpop.f32.mrb[0].mxu0
      %v1205 = vadd.f32 %v957, %v1204
      %v1206 = vpop.f32.mrb[0].mxu0
      %v1207 = vadd.f32 %v957, %v1206
      %v1208 = vpop.f32.mrb[0].mxu0
      %v1209 = vadd.f32 %v962, %v1208
      %v1210 = vpop.f32.mrb[0].mxu0
      %v1211 = vadd.f32 %v962, %v1210
      %1212 = vmatprep.mubr.bf16.mxu0 0
      %1213 = vmatmul.mubr.bf16.gmra.mrb[0].mxu0 %v1124
      %v1214 = vpop.f32.mrb[0].mxu0
      %v1215 = vadd.f32 %v967, %v1214
      %v1216 = vpop.f32.mrb[0].mxu0
      %v1217 = vadd.f32 %v967, %v1216
      %v1218 = vpop.f32.mrb[0].mxu0
      %v1219 = vadd.f32 %v972, %v1218
      %v1220 = vpop.f32.mrb[0].mxu0
      %v1221 = vadd.f32 %v972, %v1220
      %1222 = vmatprep.mubr.bf16.mxu0 0
      %1223 = vmatmul.mubr.bf16.gmra.mrb[0].mxu0 %v1127
      %v1224 = vpop.f32.mrb[0].mxu0
      %v1225 = vadd.f32 %v977, %v1224
      %v1226 = vpop.f32.mrb[0].mxu0
      %v1227 = vadd.f32 %v977, %v1226
      %v1228 = vpop.f32.mrb[0].mxu0
      %v1229 = vadd.f32 %v982, %v1228
      %v1230 = vpop.f32.mrb[0].mxu0
      %v1231 = vadd.f32 %v982, %v1230
      %1232 = vmatprep.mubr.bf16.mxu0 0
      %1233 = vmatmul.mubr.bf16.gmra.mrb[0].mxu0 %v1130
      %v1234 = vpop.f32.mrb[0].mxu0
      %v1235 = vadd.f32 %v987, %v1234
      %v1236 = vpop.f32.mrb[0].mxu0
      %v1237 = vadd.f32 %v987, %v1236
      %v1238 = vpop.f32.mrb[0].mxu0
      %v1239 = vadd.f32 %v992, %v1238
      %v1240 = vpop.f32.mrb[0].mxu0
      %v1241 = vadd.f32 %v992, %v1240
      %1242 = vmatprep.mubr.bf16.mxu0 0
      %1243 = vmatmul.mubr.bf16.gmra.mrb[0].mxu0 %v1133
      %v1244 = vpop.f32.mrb[0].mxu0
      %v1245 = vadd.f32 %v997, %v1244
      %v1246 = vpop.f32.mrb[0].mxu0
      %v1247 = vadd.f32 %v997, %v1246
      %v1248 = vpop.f32.mrb[0].mxu0
      %v1249 = vadd.f32 %v1002, %v1248
      %v1250 = vpop.f32.mrb[0].mxu0
      %v1251 = vadd.f32 %v1002, %v1250
      %1252 = vmatprep.mubr.bf16.mxu0 0
      %1253 = vmatmul.mubr.bf16.gmra.mrb[0].mxu0 %v1136
      %v1254 = vpop.f32.mrb[0].mxu0
      %v1255 = vadd.f32 %v1007, %v1254
      %v1256 = vpop.f32.mrb[0].mxu0
      %v1257 = vadd.f32 %v1007, %v1256
      %v1258 = vpop.f32.mrb[0].mxu0
      %v1259 = vadd.f32 %v1012, %v1258
      %v1260 = vpop.f32.mrb[0].mxu0
      %v1261 = vadd.f32 %v1012, %v1260
      %1262 = vmatprep.mubr.bf16.mxu0 0
      %1263 = vmatmul.mubr.bf16.gmra.mrb[0].mxu0 %v1139
      %v1264 = vpop.f32.mrb[0].mxu0
      %v1265 = vadd.f32 %v1017, %v1264
      %v1266 = vpop.f32.mrb[0].mxu0
      %v1267 = vadd.f32 %v1017, %v1266
      %v1268 = vpop.f32.mrb[0].mxu0
      %v1269 = vadd.f32 %v1022, %v1268
      %v1270 = vpop.f32.mrb[0].mxu0
      %v1271 = vadd.f32 %v1022, %v1270
      %1272 = vmatprep.mubr.bf16.mxu0 0
      %1273 = vmatmul.mubr.bf16.gmra.mrb[0].mxu0 %v1142
      %v1274 = vpop.f32.mrb[0].mxu0
      %v1275 = vadd.f32 %v1027, %v1274
      %v1276 = vpop.f32.mrb[0].mxu0
      %v1277 = vadd.f32 %v1027, %v1276
      %v1278 = vpop.f32.mrb[0].mxu0
      %v1279 = vadd.f32 %v1032, %v1278
      %v1280 = vpop.f32.mrb[0].mxu0
      %v1281 = vadd.f32 %v1032, %v1280
      %1282 = vmatprep.mubr.bf16.mxu0 0
      %1283 = vmatmul.mubr.bf16.gmra.mrb[0].mxu0 %v1145
      %v1284 = vpop.f32.mrb[0].mxu0
      %v1285 = vadd.f32 %v1037, %v1284
      %v1286 = vpop.f32.mrb[0].mxu0
      %v1287 = vadd.f32 %v1037, %v1286
      %v1288 = vpop.f32.mrb[0].mxu0
      %v1289 = vadd.f32 %v1042, %v1288
      %v1290 = vpop.f32.mrb[0].mxu0
      %v1291 = vadd.f32 %v1042, %v1290
      %1292 = vmatprep.mubr.bf16.mxu0 0
      %1293 = vmatmul.mubr.bf16.gmra.mrb[0].mxu0 %v1148
      %v1294 = vpop.f32.mrb[0].mxu0
      %v1295 = vadd.f32 %v1047, %v1294
      %v1296 = vpop.f32.mrb[0].mxu0
      %v1297 = vadd.f32 %v1047, %v1296
      %v1298 = vpop.f32.mrb[0].mxu0
      %v1299 = vadd.f32 %v1052, %v1298
      %v1300 = vpop.f32.mrb[0].mxu0
      %v1301 = vadd.f32 %v1052, %v1300
      %1302 = vdwg.mxu0
      %v1303 = vpack.c.bf16 %v1189, %v1185
      %v1304 = vpack.c.bf16 %v1191, %v1187
      %v1305 = vpack.c.bf16 %v1199, %v1195
      %v1306 = vpack.c.bf16 %v1201, %v1197
      %v1307 = vpack.c.bf16 %v1209, %v1205
      %v1308 = vpack.c.bf16 %v1211, %v1207
      %v1309 = vpack.c.bf16 %v1219, %v1215
      %v1310 = vpack.c.bf16 %v1221, %v1217
      %v1311 = vpack.c.bf16 %v1229, %v1225
      %v1312 = vpack.c.bf16 %v1231, %v1227
      %v1313 = vpack.c.bf16 %v1239, %v1235
      %v1314 = vpack.c.bf16 %v1241, %v1237
      %v1315 = vpack.c.bf16 %v1249, %v1245
      %v1316 = vpack.c.bf16 %v1251, %v1247
      %v1317 = vpack.c.bf16 %v1259, %v1255
      %v1318 = vpack.c.bf16 %v1261, %v1257
      %v1319 = vpack.c.bf16 %v1269, %v1265
      %v1320 = vpack.c.bf16 %v1271, %v1267
      %v1321 = vpack.c.bf16 %v1279, %v1275
      %v1322 = vpack.c.bf16 %v1281, %v1277
      %v1323 = vpack.c.bf16 %v1289, %v1285
      %v1324 = vpack.c.bf16 %v1291, %v1287
      %v1325 = vpack.c.bf16 %v1299, %v1295
      %v1326 = vpack.c.bf16 %v1301, %v1297
      %1327 = vst [vmem:[#allocation2] sm:$0xff] %v1303
      %1328 = vst [vmem:[#allocation2 + $0x8] sm:$0xff] %v1304
      %1329 = vst [vmem:[#allocation2 + $0x10] sm:$0xff] %v1305
      %1330 = vst [vmem:[#allocation2 + $0x18] sm:$0xff] %v1306
      %1331 = vst [vmem:[#allocation2 + $0x20] sm:$0xff] %v1307
      %1332 = vst [vmem:[#allocation2 + $0x28] sm:$0xff] %v1308
      %1333 = vst [vmem:[#allocation2 + $0x30] sm:$0xff] %v1309
      %1334 = vst [vmem:[#allocation2 + $0x38] sm:$0xff] %v1310
      %1335 = vst [vmem:[#allocation2 + $0x40] sm:$0xff] %v1311
      %1336 = vst [vmem:[#allocation2 + $0x48] sm:$0xff] %v1312
      %1337 = vst [vmem:[#allocation2 + $0x50] sm:$0xff] %v1313
      %1338 = vst [vmem:[#allocation2 + $0x58] sm:$0xff] %v1314
      %1339 = vst [vmem:[#allocation2 + $0x60] sm:$0xff] %v1315
      %1340 = vst [vmem:[#allocation2 + $0x68] sm:$0xff] %v1316
      %1341 = vst [vmem:[#allocation2 + $0x70] sm:$0xff] %v1317
      %1342 = vst [vmem:[#allocation2 + $0x78] sm:$0xff] %v1318
      %1343 = vst [vmem:[#allocation2 + $0x80] sm:$0xff] %v1319
      %1344 = vst [vmem:[#allocation2 + $0x88] sm:$0xff] %v1320
      %1345 = vst [vmem:[#allocation2 + $0x90] sm:$0xff] %v1321
      %1346 = vst [vmem:[#allocation2 + $0x98] sm:$0xff] %v1322
      %1347 = vst [vmem:[#allocation2 + $0xa0] sm:$0xff] %v1323
      %1348 = vst [vmem:[#allocation2 + $0xa8] sm:$0xff] %v1324
      %1349 = vst [vmem:[#allocation2 + $0xb0] sm:$0xff] %v1325
      %1350 = vst [vmem:[#allocation2 + $0xb8] sm:$0xff] %v1326
      loop: start=0, step=1, limit=2
      $region53: #{attention_block_pallas.1} parent=51 // loop_pre_header
        _
      $region54: #{attention_block_pallas.1} parent=51 // loop_header
        %s1352 = sphi 0, %s1356
        %p1353 = scmp.ge.s32.totalorder %s1352, 2
      $region55: #{attention_block_pallas.1} parent=51 // loop_header_branch
        %1355 = sbr.rel (%p1353) target = $region59
      $region56: #{attention_block_pallas.1} parent=51 // loop_body
        %s1357 = smul.u32 %s1352, 12
        %s1358 = smul.addr %s1357, 8
        %s1359 = scalar_lea.vmem [#allocation2], %s1358
        %v1360 = vld [vmem:[%s1359] sm:$0xff]
        %v1361 = vld [vmem:[%s1359 + $0x8] sm:$0xff]
        %v1362 = vld [vmem:[%s1359 + $0x10] sm:$0xff]
        %v1363 = vld [vmem:[%s1359 + $0x18] sm:$0xff]
        %v1364 = vld [vmem:[%s1359 + $0x20] sm:$0xff]
        %v1365 = vld [vmem:[%s1359 + $0x28] sm:$0xff]
        %v1366 = vld [vmem:[%s1359 + $0x30] sm:$0xff]
        %v1367 = vld [vmem:[%s1359 + $0x38] sm:$0xff]
        %v1368 = vld [vmem:[%s1359 + $0x40] sm:$0xff]
        %v1369 = vld [vmem:[%s1359 + $0x48] sm:$0xff]
        %v1370 = vld [vmem:[%s1359 + $0x50] sm:$0xff]
        %v1371 = vld [vmem:[%s1359 + $0x58] sm:$0xff]
        %1372 = vxpose.xlu0.c.b16.start [1/8] %v1364, 128
        %1373 = vxpose.xlu0.c.b16.cont [2/8] %v1366, 128
        %1374 = vxpose.xlu0.c.b16.cont [3/8] 0, 128
        %1375 = vxpose.xlu0.c.b16.cont [4/8] 0, 128
        %1376 = vxpose.xlu0.c.b16.cont [5/8] 0, 128
        %1377 = vxpose.xlu0.c.b16.cont [6/8] 0, 128
        %1378 = vxpose.xlu0.c.b16.cont [7/8] 0, 128
        %1379 = vxpose.xlu0.c.b16.end [8/8] 0, 128
        %v1380 = vpop.trf.xlu0
        %v1381 = vpop.trf.xlu0
        %v1382 = vpop.trf.xlu0
        %v1383 = vpop.trf.xlu0
        %v1384 = vpop.trf.xlu0
        %v1385 = vpop.trf.xlu0
        %v1386 = vpop.trf.xlu0
        %v1387 = vpop.trf.xlu0
        %1388 = vxpose.xlu0.c.b16.start [1/8] %v1365, 128
        %1389 = vxpose.xlu0.c.b16.cont [2/8] %v1367, 128
        %1390 = vxpose.xlu0.c.b16.cont [3/8] 0, 128
        %1391 = vxpose.xlu0.c.b16.cont [4/8] 0, 128
        %1392 = vxpose.xlu0.c.b16.cont [5/8] 0, 128
        %1393 = vxpose.xlu0.c.b16.cont [6/8] 0, 128
        %1394 = vxpose.xlu0.c.b16.cont [7/8] 0, 128
        %1395 = vxpose.xlu0.c.b16.end [8/8] 0, 128
        %v1396 = vpop.trf.xlu0
        %v1397 = vpop.trf.xlu0
        %v1398 = vpop.trf.xlu0
        %v1399 = vpop.trf.xlu0
        %v1400 = vpop.trf.xlu0
        %v1401 = vpop.trf.xlu0
        %v1402 = vpop.trf.xlu0
        %v1403 = vpop.trf.xlu0
        %vm1404 = vcmask 261120
        %v1406 = vsel %vm1404, %v1380, 0
        %v1409 = vsel %vm1404, %v1381, 0
        %v1412 = vsel %vm1404, %v1382, 0
        %v1415 = vsel %vm1404, %v1383, 0
        %v1418 = vsel %vm1404, %v1384, 0
        %v1421 = vsel %vm1404, %v1385, 0
        %v1424 = vsel %vm1404, %v1386, 0
        %v1427 = vsel %vm1404, %v1387, 0
        %v1430 = vsel %vm1404, %v1396, 0
        %v1433 = vsel %vm1404, %v1397, 0
        %v1436 = vsel %vm1404, %v1398, 0
        %v1439 = vsel %vm1404, %v1399, 0
        %v1442 = vsel %vm1404, %v1400, 0
        %v1445 = vsel %vm1404, %v1401, 0
        %v1448 = vsel %vm1404, %v1402, 0
        %v1451 = vsel %vm1404, %v1403, 0
        %1453 = vmatprep.subr.bf16.mxu0 %v1361
        %1454 = vmatpush1.bf16.msra.mxu0 %v1360
        %1455 = vmatprep.subr.bf16.mxu0 %v1363
        %1456 = vmatpush1.bf16.msra.mxu0 %v1362
        %1457 = vmatprep.subr.bf16.mxu0 0
        %1458 = vmatpush1.bf16.msra.mxu0 0
        %1459 = vmatprep.subr.bf16.mxu0 0
        %1460 = vmatpush1.bf16.msra.mxu0 0
        %1461 = vmatprep.subr.bf16.mxu0 0
        %1462 = vmatpush1.bf16.msra.mxu0 0
        %1463 = vmatprep.subr.bf16.mxu0 0
        %1464 = vmatpush1.bf16.msra.mxu0 0
        %1465 = vmatprep.subr.bf16.mxu0 0
        %1466 = vmatpush1.bf16.msra.mxu0 0
        %1467 = vmatprep.subr.bf16.mxu0 0
        %1468 = vmatpush1.bf16.msra.mxu0 0
        %1469 = vmatprep.subr.bf16.mxu0 0
        %1470 = vmatpush1.bf16.msra.mxu0 0
        %1471 = vmatprep.subr.bf16.mxu0 0
        %1472 = vmatpush1.bf16.msra.mxu0 0
        %1473 = vmatprep.subr.bf16.mxu0 0
        %1474 = vmatpush1.bf16.msra.mxu0 0
        %1475 = vmatprep.subr.bf16.mxu0 0
        %1476 = vmatpush1.bf16.msra.mxu0 0
        %1477 = vmatprep.subr.bf16.mxu0 0
        %1478 = vmatpush1.bf16.msra.mxu0 0
        %1479 = vmatprep.subr.bf16.mxu0 0
        %1480 = vmatpush1.bf16.msra.mxu0 0
        %1481 = vmatprep.subr.bf16.mxu0 0
        %1482 = vmatpush1.bf16.msra.mxu0 0
        %1483 = vmatprep.subr.bf16.mxu0 0
        %1484 = vmatpush1.bf16.msra.mxu0 0
        %1485 = vmatprep.mubr.bf16.mxu0 0
        %1486 = vmatmul.mubr.bf16.gmra.mrb[0].mxu0 %v1406
        %v1487 = vpop.f32.mrb[0].mxu0
        %v1488 = vadd.f32 0.0, %v1487
        %v1489 = vpop.f32.mrb[0].mxu0
        %v1490 = vadd.f32 0.0, %v1489
        %v1491 = vpop.f32.mrb[0].mxu0
        %v1492 = vadd.f32 0.0, %v1491
        %v1493 = vpop.f32.mrb[0].mxu0
        %v1494 = vadd.f32 0.0, %v1493
        %1495 = vmatprep.mubr.bf16.mxu0 0
        %1496 = vmatmul.mubr.bf16.gmra.mrb[0].mxu0 %v1409
        %v1497 = vpop.f32.mrb[0].mxu0
        %v1498 = vadd.f32 0.0, %v1497
        %v1499 = vpop.f32.mrb[0].mxu0
        %v1500 = vadd.f32 0.0, %v1499
        %v1501 = vpop.f32.mrb[0].mxu0
        %v1502 = vadd.f32 0.0, %v1501
        %v1503 = vpop.f32.mrb[0].mxu0
        %v1504 = vadd.f32 0.0, %v1503
        %1505 = vmatprep.mubr.bf16.mxu0 0
        %1506 = vmatmul.mubr.bf16.gmra.mrb[0].mxu0 %v1412
        %v1507 = vpop.f32.mrb[0].mxu0
        %v1508 = vadd.f32 0.0, %v1507
        %v1509 = vpop.f32.mrb[0].mxu0
        %v1510 = vadd.f32 0.0, %v1509
        %v1511 = vpop.f32.mrb[0].mxu0
        %v1512 = vadd.f32 0.0, %v1511
        %v1513 = vpop.f32.mrb[0].mxu0
        %v1514 = vadd.f32 0.0, %v1513
        %1515 = vmatprep.mubr.bf16.mxu0 0
        %1516 = vmatmul.mubr.bf16.gmra.mrb[0].mxu0 %v1415
        %v1517 = vpop.f32.mrb[0].mxu0
        %v1518 = vadd.f32 0.0, %v1517
        %v1519 = vpop.f32.mrb[0].mxu0
        %v1520 = vadd.f32 0.0, %v1519
        %v1521 = vpop.f32.mrb[0].mxu0
        %v1522 = vadd.f32 0.0, %v1521
        %v1523 = vpop.f32.mrb[0].mxu0
        %v1524 = vadd.f32 0.0, %v1523
        %1525 = vmatprep.mubr.bf16.mxu0 0
        %1526 = vmatmul.mubr.bf16.gmra.mrb[0].mxu0 %v1418
        %v1527 = vpop.f32.mrb[0].mxu0
        %v1528 = vadd.f32 0.0, %v1527
        %v1529 = vpop.f32.mrb[0].mxu0
        %v1530 = vadd.f32 0.0, %v1529
        %v1531 = vpop.f32.mrb[0].mxu0
        %v1532 = vadd.f32 0.0, %v1531
        %v1533 = vpop.f32.mrb[0].mxu0
        %v1534 = vadd.f32 0.0, %v1533
        %1535 = vmatprep.mubr.bf16.mxu0 0
        %1536 = vmatmul.mubr.bf16.gmra.mrb[0].mxu0 %v1421
        %v1537 = vpop.f32.mrb[0].mxu0
        %v1538 = vadd.f32 0.0, %v1537
        %v1539 = vpop.f32.mrb[0].mxu0
        %v1540 = vadd.f32 0.0, %v1539
        %v1541 = vpop.f32.mrb[0].mxu0
        %v1542 = vadd.f32 0.0, %v1541
        %v1543 = vpop.f32.mrb[0].mxu0
        %v1544 = vadd.f32 0.0, %v1543
        %1545 = vmatprep.mubr.bf16.mxu0 0
        %1546 = vmatmul.mubr.bf16.gmra.mrb[0].mxu0 %v1424
        %v1547 = vpop.f32.mrb[0].mxu0
        %v1548 = vadd.f32 0.0, %v1547
        %v1549 = vpop.f32.mrb[0].mxu0
        %v1550 = vadd.f32 0.0, %v1549
        %v1551 = vpop.f32.mrb[0].mxu0
        %v1552 = vadd.f32 0.0, %v1551
        %v1553 = vpop.f32.mrb[0].mxu0
        %v1554 = vadd.f32 0.0, %v1553
        %1555 = vmatprep.mubr.bf16.mxu0 0
        %1556 = vmatmul.mubr.bf16.gmra.mrb[0].mxu0 %v1427
        %v1557 = vpop.f32.mrb[0].mxu0
        %v1558 = vadd.f32 0.0, %v1557
        %v1559 = vpop.f32.mrb[0].mxu0
        %v1560 = vadd.f32 0.0, %v1559
        %v1561 = vpop.f32.mrb[0].mxu0
        %v1562 = vadd.f32 0.0, %v1561
        %v1563 = vpop.f32.mrb[0].mxu0
        %v1564 = vadd.f32 0.0, %v1563
        %1565 = vmatprep.mubr.bf16.mxu0 0
        %1566 = vmatmul.mubr.bf16.gmra.mrb[0].mxu0 %v1430
        %v1567 = vpop.f32.mrb[0].mxu0
        %v1568 = vadd.f32 0.0, %v1567
        %v1569 = vpop.f32.mrb[0].mxu0
        %v1570 = vadd.f32 0.0, %v1569
        %v1571 = vpop.f32.mrb[0].mxu0
        %v1572 = vadd.f32 0.0, %v1571
        %v1573 = vpop.f32.mrb[0].mxu0
        %v1574 = vadd.f32 0.0, %v1573
        %1575 = vmatprep.mubr.bf16.mxu0 0
        %1576 = vmatmul.mubr.bf16.gmra.mrb[0].mxu0 %v1433
        %v1577 = vpop.f32.mrb[0].mxu0
        %v1578 = vadd.f32 0.0, %v1577
        %v1579 = vpop.f32.mrb[0].mxu0
        %v1580 = vadd.f32 0.0, %v1579
        %v1581 = vpop.f32.mrb[0].mxu0
        %v1582 = vadd.f32 0.0, %v1581
        %v1583 = vpop.f32.mrb[0].mxu0
        %v1584 = vadd.f32 0.0, %v1583
        %1585 = vmatprep.mubr.bf16.mxu0 0
        %1586 = vmatmul.mubr.bf16.gmra.mrb[0].mxu0 %v1436
        %v1587 = vpop.f32.mrb[0].mxu0
        %v1588 = vadd.f32 0.0, %v1587
        %v1589 = vpop.f32.mrb[0].mxu0
        %v1590 = vadd.f32 0.0, %v1589
        %v1591 = vpop.f32.mrb[0].mxu0
        %v1592 = vadd.f32 0.0, %v1591
        %v1593 = vpop.f32.mrb[0].mxu0
        %v1594 = vadd.f32 0.0, %v1593
        %1595 = vmatprep.mubr.bf16.mxu0 0
        %1596 = vmatmul.mubr.bf16.gmra.mrb[0].mxu0 %v1439
        %v1597 = vpop.f32.mrb[0].mxu0
        %v1598 = vadd.f32 0.0, %v1597
        %v1599 = vpop.f32.mrb[0].mxu0
        %v1600 = vadd.f32 0.0, %v1599
        %v1601 = vpop.f32.mrb[0].mxu0
        %v1602 = vadd.f32 0.0, %v1601
        %v1603 = vpop.f32.mrb[0].mxu0
        %v1604 = vadd.f32 0.0, %v1603
        %1605 = vmatprep.mubr.bf16.mxu0 0
        %1606 = vmatmul.mubr.bf16.gmra.mrb[0].mxu0 %v1442
        %v1607 = vpop.f32.mrb[0].mxu0
        %v1608 = vadd.f32 0.0, %v1607
        %v1609 = vpop.f32.mrb[0].mxu0
        %v1610 = vadd.f32 0.0, %v1609
        %v1611 = vpop.f32.mrb[0].mxu0
        %v1612 = vadd.f32 0.0, %v1611
        %v1613 = vpop.f32.mrb[0].mxu0
        %v1614 = vadd.f32 0.0, %v1613
        %1615 = vmatprep.mubr.bf16.mxu0 0
        %1616 = vmatmul.mubr.bf16.gmra.mrb[0].mxu0 %v1445
        %v1617 = vpop.f32.mrb[0].mxu0
        %v1618 = vadd.f32 0.0, %v1617
        %v1619 = vpop.f32.mrb[0].mxu0
        %v1620 = vadd.f32 0.0, %v1619
        %v1621 = vpop.f32.mrb[0].mxu0
        %v1622 = vadd.f32 0.0, %v1621
        %v1623 = vpop.f32.mrb[0].mxu0
        %v1624 = vadd.f32 0.0, %v1623
        %1625 = vmatprep.mubr.bf16.mxu0 0
        %1626 = vmatmul.mubr.bf16.gmra.mrb[0].mxu0 %v1448
        %v1627 = vpop.f32.mrb[0].mxu0
        %v1628 = vadd.f32 0.0, %v1627
        %v1629 = vpop.f32.mrb[0].mxu0
        %v1630 = vadd.f32 0.0, %v1629
        %v1631 = vpop.f32.mrb[0].mxu0
        %v1632 = vadd.f32 0.0, %v1631
        %v1633 = vpop.f32.mrb[0].mxu0
        %v1634 = vadd.f32 0.0, %v1633
        %1635 = vmatprep.mubr.bf16.mxu0 0
        %1636 = vmatmul.mubr.bf16.gmra.mrb[0].mxu0 %v1451
        %v1637 = vpop.f32.mrb[0].mxu0
        %v1638 = vadd.f32 0.0, %v1637
        %v1639 = vpop.f32.mrb[0].mxu0
        %v1640 = vadd.f32 0.0, %v1639
        %v1641 = vpop.f32.mrb[0].mxu0
        %v1642 = vadd.f32 0.0, %v1641
        %v1643 = vpop.f32.mrb[0].mxu0
        %v1644 = vadd.f32 0.0, %v1643
        %1645 = vdwg.mxu0
        %v1646 = vmax.f32 %v1488, %v1498
        %v1647 = vmax.f32 %v1492, %v1502
        %v1648 = vmax.f32 %v1646, %v1508
        %v1649 = vmax.f32 %v1647, %v1512
        %v1650 = vmax.f32 %v1648, %v1518
        %v1651 = vmax.f32 %v1649, %v1522
        %v1652 = vmax.f32 %v1650, %v1528
        %v1653 = vmax.f32 %v1651, %v1532
        %v1654 = vmax.f32 %v1652, %v1538
        %v1655 = vmax.f32 %v1653, %v1542
        %v1656 = vmax.f32 %v1654, %v1548
        %v1657 = vmax.f32 %v1655, %v1552
        %v1658 = vmax.f32 %v1656, %v1558
        %v1659 = vmax.f32 %v1657, %v1562
        %v1660 = vmax.f32 %v1658, %v1568
        %v1661 = vmax.f32 %v1659, %v1572
        %v1662 = vmax.f32 %v1660, %v1578
        %v1663 = vmax.f32 %v1661, %v1582
        %v1664 = vmax.f32 %v1662, %v1588
        %v1665 = vmax.f32 %v1663, %v1592
        %v1666 = vmax.f32 %v1664, %v1598
        %v1667 = vmax.f32 %v1665, %v1602
        %v1668 = vmax.f32 %v1666, %v1608
        %v1669 = vmax.f32 %v1667, %v1612
        %v1670 = vmax.f32 %v1668, %v1618
        %v1671 = vmax.f32 %v1669, %v1622
        %v1672 = vmax.f32 %v1670, %v1628
        %v1673 = vmax.f32 %v1671, %v1632
        %v1674 = vmax.f32 %v1672, %v1638
        %v1675 = vmax.f32 %v1673, %v1642
        %v1676 = vmax.f32 %v1674, %v1675
        %v1677 = vrot.slane %v1676, 4
        %v1678 = vmax.f32 %v1676, %v1677
        %v1679 = vrot.slane %v1678, 2
        %v1680 = vmax.f32 %v1678, %v1679
        %v1681 = vrot.slane %v1680, 1
        %v1682 = vmax.f32 %v1680, %v1681
        %v1683 = vmax.f32 %v1490, %v1500
        %v1684 = vmax.f32 %v1494, %v1504
        %v1685 = vmax.f32 %v1683, %v1510
        %v1686 = vmax.f32 %v1684, %v1514
        %v1687 = vmax.f32 %v1685, %v1520
        %v1688 = vmax.f32 %v1686, %v1524
        %v1689 = vmax.f32 %v1687, %v1530
        %v1690 = vmax.f32 %v1688, %v1534
        %v1691 = vmax.f32 %v1689, %v1540
        %v1692 = vmax.f32 %v1690, %v1544
        %v1693 = vmax.f32 %v1691, %v1550
        %v1694 = vmax.f32 %v1692, %v1554
        %v1695 = vmax.f32 %v1693, %v1560
        %v1696 = vmax.f32 %v1694, %v1564
        %v1697 = vmax.f32 %v1695, %v1570
        %v1698 = vmax.f32 %v1696, %v1574
        %v1699 = vmax.f32 %v1697, %v1580
        %v1700 = vmax.f32 %v1698, %v1584
        %v1701 = vmax.f32 %v1699, %v1590
        %v1702 = vmax.f32 %v1700, %v1594
        %v1703 = vmax.f32 %v1701, %v1600
        %v1704 = vmax.f32 %v1702, %v1604
        %v1705 = vmax.f32 %v1703, %v1610
        %v1706 = vmax.f32 %v1704, %v1614
        %v1707 = vmax.f32 %v1705, %v1620
        %v1708 = vmax.f32 %v1706, %v1624
        %v1709 = vmax.f32 %v1707, %v1630
        %v1710 = vmax.f32 %v1708, %v1634
        %v1711 = vmax.f32 %v1709, %v1640
        %v1712 = vmax.f32 %v1710, %v1644
        %v1713 = vmax.f32 %v1711, %v1712
        %v1714 = vrot.slane %v1713, 4
        %v1715 = vmax.f32 %v1713, %v1714
        %v1716 = vrot.slane %v1715, 2
        %v1717 = vmax.f32 %v1715, %v1716
        %v1718 = vrot.slane %v1717, 1
        %v1719 = vmax.f32 %v1717, %v1718
        %v1720 = vsub.f32 %v1488, %v1682
        %v1721 = vsub.f32 %v1490, %v1719
        %v1722 = vsub.f32 %v1492, %v1682
        %v1723 = vsub.f32 %v1494, %v1719
        %v1724 = vsub.f32 %v1498, %v1682
        %v1725 = vsub.f32 %v1500, %v1719
        %v1726 = vsub.f32 %v1502, %v1682
        %v1727 = vsub.f32 %v1504, %v1719
        %v1728 = vsub.f32 %v1508, %v1682
        %v1729 = vsub.f32 %v1510, %v1719
        %v1730 = vsub.f32 %v1512, %v1682
        %v1731 = vsub.f32 %v1514, %v1719
        %v1732 = vsub.f32 %v1518, %v1682
        %v1733 = vsub.f32 %v1520, %v1719
        %v1734 = vsub.f32 %v1522, %v1682
        %v1735 = vsub.f32 %v1524, %v1719
        %v1736 = vsub.f32 %v1528, %v1682
        %v1737 = vsub.f32 %v1530, %v1719
        %v1738 = vsub.f32 %v1532, %v1682
        %v1739 = vsub.f32 %v1534, %v1719
        %v1740 = vsub.f32 %v1538, %v1682
        %v1741 = vsub.f32 %v1540, %v1719
        %v1742 = vsub.f32 %v1542, %v1682
        %v1743 = vsub.f32 %v1544, %v1719
        %v1744 = vsub.f32 %v1548, %v1682
        %v1745 = vsub.f32 %v1550, %v1719
        %v1746 = vsub.f32 %v1552, %v1682
        %v1747 = vsub.f32 %v1554, %v1719
        %v1748 = vsub.f32 %v1558, %v1682
        %v1749 = vsub.f32 %v1560, %v1719
        %v1750 = vsub.f32 %v1562, %v1682
        %v1751 = vsub.f32 %v1564, %v1719
        %v1752 = vsub.f32 %v1568, %v1682
        %v1753 = vsub.f32 %v1570, %v1719
        %v1754 = vsub.f32 %v1572, %v1682
        %v1755 = vsub.f32 %v1574, %v1719
        %v1756 = vsub.f32 %v1578, %v1682
        %v1757 = vsub.f32 %v1580, %v1719
        %v1758 = vsub.f32 %v1582, %v1682
        %v1759 = vsub.f32 %v1584, %v1719
        %v1760 = vsub.f32 %v1588, %v1682
        %v1761 = vsub.f32 %v1590, %v1719
        %v1762 = vsub.f32 %v1592, %v1682
        %v1763 = vsub.f32 %v1594, %v1719
        %v1764 = vsub.f32 %v1598, %v1682
        %v1765 = vsub.f32 %v1600, %v1719
        %v1766 = vsub.f32 %v1602, %v1682
        %v1767 = vsub.f32 %v1604, %v1719
        %v1768 = vsub.f32 %v1608, %v1682
        %v1769 = vsub.f32 %v1610, %v1719
        %v1770 = vsub.f32 %v1612, %v1682
        %v1771 = vsub.f32 %v1614, %v1719
        %v1772 = vsub.f32 %v1618, %v1682
        %v1773 = vsub.f32 %v1620, %v1719
        %v1774 = vsub.f32 %v1622, %v1682
        %v1775 = vsub.f32 %v1624, %v1719
        %v1776 = vsub.f32 %v1628, %v1682
        %v1777 = vsub.f32 %v1630, %v1719
        %v1778 = vsub.f32 %v1632, %v1682
        %v1779 = vsub.f32 %v1634, %v1719
        %v1780 = vsub.f32 %v1638, %v1682
        %v1781 = vsub.f32 %v1640, %v1719
        %v1782 = vsub.f32 %v1642, %v1682
        %v1783 = vsub.f32 %v1644, %v1719
        %v1784 = vmul.f32 %v1720, 1.442695
        %v1785 = vpow.pop %v1784
        %v1786 = vmul.f32 %v1721, 1.442695
        %v1787 = vpow.pop %v1786
        %v1788 = vmul.f32 %v1722, 1.442695
        %v1789 = vpow.pop %v1788
        %v1790 = vmul.f32 %v1723, 1.442695
        %v1791 = vpow.pop %v1790
        %v1792 = vmul.f32 %v1724, 1.442695
        %v1793 = vpow.pop %v1792
        %v1794 = vmul.f32 %v1725, 1.442695
        %v1795 = vpow.pop %v1794
        %v1796 = vmul.f32 %v1726, 1.442695
        %v1797 = vpow.pop %v1796
        %v1798 = vmul.f32 %v1727, 1.442695
        %v1799 = vpow.pop %v1798
        %v1800 = vmul.f32 %v1728, 1.442695
        %v1801 = vpow.pop %v1800
        %v1802 = vmul.f32 %v1729, 1.442695
        %v1803 = vpow.pop %v1802
        %v1804 = vmul.f32 %v1730, 1.442695
        %v1805 = vpow.pop %v1804
        %v1806 = vmul.f32 %v1731, 1.442695
        %v1807 = vpow.pop %v1806
        %v1808 = vmul.f32 %v1732, 1.442695
        %v1809 = vpow.pop %v1808
        %v1810 = vmul.f32 %v1733, 1.442695
        %v1811 = vpow.pop %v1810
        %v1812 = vmul.f32 %v1734, 1.442695
        %v1813 = vpow.pop %v1812
        %v1814 = vmul.f32 %v1735, 1.442695
        %v1815 = vpow.pop %v1814
        %v1816 = vmul.f32 %v1736, 1.442695
        %v1817 = vpow.pop %v1816
        %v1818 = vmul.f32 %v1737, 1.442695
        %v1819 = vpow.pop %v1818
        %v1820 = vmul.f32 %v1738, 1.442695
        %v1821 = vpow.pop %v1820
        %v1822 = vmul.f32 %v1739, 1.442695
        %v1823 = vpow.pop %v1822
        %v1824 = vmul.f32 %v1740, 1.442695
        %v1825 = vpow.pop %v1824
        %v1826 = vmul.f32 %v1741, 1.442695
        %v1827 = vpow.pop %v1826
        %v1828 = vmul.f32 %v1742, 1.442695
        %v1829 = vpow.pop %v1828
        %v1830 = vmul.f32 %v1743, 1.442695
        %v1831 = vpow.pop %v1830
        %v1832 = vmul.f32 %v1744, 1.442695
        %v1833 = vpow.pop %v1832
        %v1834 = vmul.f32 %v1745, 1.442695
        %v1835 = vpow.pop %v1834
        %v1836 = vmul.f32 %v1746, 1.442695
        %v1837 = vpow.pop %v1836
        %v1838 = vmul.f32 %v1747, 1.442695
        %v1839 = vpow.pop %v1838
        %v1840 = vmul.f32 %v1748, 1.442695
        %v1841 = vpow.pop %v1840
        %v1842 = vmul.f32 %v1749, 1.442695
        %v1843 = vpow.pop %v1842
        %v1844 = vmul.f32 %v1750, 1.442695
        %v1845 = vpow.pop %v1844
        %v1846 = vmul.f32 %v1751, 1.442695
        %v1847 = vpow.pop %v1846
        %v1848 = vmul.f32 %v1752, 1.442695
        %v1849 = vpow.pop %v1848
        %v1850 = vmul.f32 %v1753, 1.442695
        %v1851 = vpow.pop %v1850
        %v1852 = vmul.f32 %v1754, 1.442695
        %v1853 = vpow.pop %v1852
        %v1854 = vmul.f32 %v1755, 1.442695
        %v1855 = vpow.pop %v1854
        %v1856 = vmul.f32 %v1756, 1.442695
        %v1857 = vpow.pop %v1856
        %v1858 = vmul.f32 %v1757, 1.442695
        %v1859 = vpow.pop %v1858
        %v1860 = vmul.f32 %v1758, 1.442695
        %v1861 = vpow.pop %v1860
        %v1862 = vmul.f32 %v1759, 1.442695
        %v1863 = vpow.pop %v1862
        %v1864 = vmul.f32 %v1760, 1.442695
        %v1865 = vpow.pop %v1864
        %v1866 = vmul.f32 %v1761, 1.442695
        %v1867 = vpow.pop %v1866
        %v1868 = vmul.f32 %v1762, 1.442695
        %v1869 = vpow.pop %v1868
        %v1870 = vmul.f32 %v1763, 1.442695
        %v1871 = vpow.pop %v1870
        %v1872 = vmul.f32 %v1764, 1.442695
        %v1873 = vpow.pop %v1872
        %v1874 = vmul.f32 %v1765, 1.442695
        %v1875 = vpow.pop %v1874
        %v1876 = vmul.f32 %v1766, 1.442695
        %v1877 = vpow.pop %v1876
        %v1878 = vmul.f32 %v1767, 1.442695
        %v1879 = vpow.pop %v1878
        %v1880 = vmul.f32 %v1768, 1.442695
        %v1881 = vpow.pop %v1880
        %v1882 = vmul.f32 %v1769, 1.442695
        %v1883 = vpow.pop %v1882
        %v1884 = vmul.f32 %v1770, 1.442695
        %v1885 = vpow.pop %v1884
        %v1886 = vmul.f32 %v1771, 1.442695
        %v1887 = vpow.pop %v1886
        %v1888 = vmul.f32 %v1772, 1.442695
        %v1889 = vpow.pop %v1888
        %v1890 = vmul.f32 %v1773, 1.442695
        %v1891 = vpow.pop %v1890
        %v1892 = vmul.f32 %v1774, 1.442695
        %v1893 = vpow.pop %v1892
        %v1894 = vmul.f32 %v1775, 1.442695
        %v1895 = vpow.pop %v1894
        %v1896 = vmul.f32 %v1776, 1.442695
        %v1897 = vpow.pop %v1896
        %v1898 = vmul.f32 %v1777, 1.442695
        %v1899 = vpow.pop %v1898
        %v1900 = vmul.f32 %v1778, 1.442695
        %v1901 = vpow.pop %v1900
        %v1902 = vmul.f32 %v1779, 1.442695
        %v1903 = vpow.pop %v1902
        %v1904 = vmul.f32 %v1780, 1.442695
        %v1905 = vpow.pop %v1904
        %v1906 = vmul.f32 %v1781, 1.442695
        %v1907 = vpow.pop %v1906
        %v1908 = vmul.f32 %v1782, 1.442695
        %v1909 = vpow.pop %v1908
        %v1910 = vmul.f32 %v1783, 1.442695
        %v1911 = vpow.pop %v1910
        %v1912 = vadd.f32 %v1785, %v1789
        %v1913 = vadd.f32 %v1912, %v1793
        %v1914 = vadd.f32 %v1913, %v1797
        %v1915 = vadd.f32 %v1914, %v1801
        %v1916 = vadd.f32 %v1915, %v1805
        %v1917 = vadd.f32 %v1916, %v1809
        %v1918 = vadd.f32 %v1917, %v1813
        %v1919 = vadd.f32 %v1918, %v1817
        %v1920 = vadd.f32 %v1919, %v1821
        %v1921 = vadd.f32 %v1920, %v1825
        %v1922 = vadd.f32 %v1921, %v1829
        %v1923 = vadd.f32 %v1922, %v1833
        %v1924 = vadd.f32 %v1923, %v1837
        %v1925 = vadd.f32 %v1924, %v1841
        %v1926 = vadd.f32 %v1925, %v1845
        %v1927 = vadd.f32 %v1926, %v1849
        %v1928 = vadd.f32 %v1927, %v1853
        %v1929 = vadd.f32 %v1928, %v1857
        %v1930 = vadd.f32 %v1929, %v1861
        %v1931 = vadd.f32 %v1930, %v1865
        %v1932 = vadd.f32 %v1931, %v1869
        %v1933 = vadd.f32 %v1932, %v1873
        %v1934 = vadd.f32 %v1933, %v1877
        %v1935 = vadd.f32 %v1934, %v1881
        %v1936 = vadd.f32 %v1935, %v1885
        %v1937 = vadd.f32 %v1936, %v1889
        %v1938 = vadd.f32 %v1937, %v1893
        %v1939 = vadd.f32 %v1938, %v1897
        %v1940 = vadd.f32 %v1939, %v1901
        %v1941 = vadd.f32 %v1940, %v1905
        %v1942 = vadd.f32 %v1941, %v1909
        %v1943 = vrot.slane %v1942, 4
        %v1944 = vadd.f32 %v1942, %v1943
        %v1945 = vrot.slane %v1944, 2
        %v1946 = vadd.f32 %v1944, %v1945
        %v1947 = vrot.slane %v1946, 1
        %v1948 = vadd.f32 %v1946, %v1947
        %v1949 = vadd.f32 %v1787, %v1791
        %v1950 = vadd.f32 %v1949, %v1795
        %v1951 = vadd.f32 %v1950, %v1799
        %v1952 = vadd.f32 %v1951, %v1803
        %v1953 = vadd.f32 %v1952, %v1807
        %v1954 = vadd.f32 %v1953, %v1811
        %v1955 = vadd.f32 %v1954, %v1815
        %v1956 = vadd.f32 %v1955, %v1819
        %v1957 = vadd.f32 %v1956, %v1823
        %v1958 = vadd.f32 %v1957, %v1827
        %v1959 = vadd.f32 %v1958, %v1831
        %v1960 = vadd.f32 %v1959, %v1835
        %v1961 = vadd.f32 %v1960, %v1839
        %v1962 = vadd.f32 %v1961, %v1843
        %v1963 = vadd.f32 %v1962, %v1847
        %v1964 = vadd.f32 %v1963, %v1851
        %v1965 = vadd.f32 %v1964, %v1855
        %v1966 = vadd.f32 %v1965, %v1859
        %v1967 = vadd.f32 %v1966, %v1863
        %v1968 = vadd.f32 %v1967, %v1867
        %v1969 = vadd.f32 %v1968, %v1871
        %v1970 = vadd.f32 %v1969, %v1875
        %v1971 = vadd.f32 %v1970, %v1879
        %v1972 = vadd.f32 %v1971, %v1883
        %v1973 = vadd.f32 %v1972, %v1887
        %v1974 = vadd.f32 %v1973, %v1891
        %v1975 = vadd.f32 %v1974, %v1895
        %v1976 = vadd.f32 %v1975, %v1899
        %v1977 = vadd.f32 %v1976, %v1903
        %v1978 = vadd.f32 %v1977, %v1907
        %v1979 = vadd.f32 %v1978, %v1911
        %v1980 = vrot.slane %v1979, 4
        %v1981 = vadd.f32 %v1979, %v1980
        %v1982 = vrot.slane %v1981, 2
        %v1983 = vadd.f32 %v1981, %v1982
        %v1984 = vrot.slane %v1983, 1
        %v1985 = vadd.f32 %v1983, %v1984
        %v1986 = vpack.c.bf16 %v1789, %v1785
        %v1987 = vpack.c.bf16 %v1791, %v1787
        %v1988 = vpack.c.bf16 %v1797, %v1793
        %v1989 = vpack.c.bf16 %v1799, %v1795
        %v1990 = vpack.c.bf16 %v1805, %v1801
        %v1991 = vpack.c.bf16 %v1807, %v1803
        %v1992 = vpack.c.bf16 %v1813, %v1809
        %v1993 = vpack.c.bf16 %v1815, %v1811
        %v1994 = vpack.c.bf16 %v1821, %v1817
        %v1995 = vpack.c.bf16 %v1823, %v1819
        %v1996 = vpack.c.bf16 %v1829, %v1825
        %v1997 = vpack.c.bf16 %v1831, %v1827
        %v1998 = vpack.c.bf16 %v1837, %v1833
        %v1999 = vpack.c.bf16 %v1839, %v1835
        %v2000 = vpack.c.bf16 %v1845, %v1841
        %v2001 = vpack.c.bf16 %v1847, %v1843
        %v2002 = vpack.c.bf16 %v1853, %v1849
        %v2003 = vpack.c.bf16 %v1855, %v1851
        %v2004 = vpack.c.bf16 %v1861, %v1857
        %v2005 = vpack.c.bf16 %v1863, %v1859
        %v2006 = vpack.c.bf16 %v1869, %v1865
        %v2007 = vpack.c.bf16 %v1871, %v1867
        %v2008 = vpack.c.bf16 %v1877, %v1873
        %v2009 = vpack.c.bf16 %v1879, %v1875
        %v2010 = vpack.c.bf16 %v1885, %v1881
        %v2011 = vpack.c.bf16 %v1887, %v1883
        %v2012 = vpack.c.bf16 %v1893, %v1889
        %v2013 = vpack.c.bf16 %v1895, %v1891
        %v2014 = vpack.c.bf16 %v1901, %v1897
        %v2015 = vpack.c.bf16 %v1903, %v1899
        %v2016 = vpack.c.bf16 %v1909, %v1905
        %v2017 = vpack.c.bf16 %v1911, %v1907
        %2018 = vmatprep.subr.bf16.mxu0 %v1987
        %2019 = vmatpush1.bf16.msra.mxu0 %v1986
        %2020 = vmatprep.subr.bf16.mxu0 %v1989
        %2021 = vmatpush1.bf16.msra.mxu0 %v1988
        %2022 = vmatprep.subr.bf16.mxu0 %v1991
        %2023 = vmatpush1.bf16.msra.mxu0 %v1990
        %2024 = vmatprep.subr.bf16.mxu0 %v1993
        %2025 = vmatpush1.bf16.msra.mxu0 %v1992
        %2026 = vmatprep.subr.bf16.mxu0 %v1995
        %2027 = vmatpush1.bf16.msra.mxu0 %v1994
        %2028 = vmatprep.subr.bf16.mxu0 %v1997
        %2029 = vmatpush1.bf16.msra.mxu0 %v1996
        %2030 = vmatprep.subr.bf16.mxu0 %v1999
        %2031 = vmatpush1.bf16.msra.mxu0 %v1998
        %2032 = vmatprep.subr.bf16.mxu0 %v2001
        %2033 = vmatpush1.bf16.msra.mxu0 %v2000
        %2034 = vmatprep.subr.bf16.mxu0 %v2003
        %2035 = vmatpush1.bf16.msra.mxu0 %v2002
        %2036 = vmatprep.subr.bf16.mxu0 %v2005
        %2037 = vmatpush1.bf16.msra.mxu0 %v2004
        %2038 = vmatprep.subr.bf16.mxu0 %v2007
        %2039 = vmatpush1.bf16.msra.mxu0 %v2006
        %2040 = vmatprep.subr.bf16.mxu0 %v2009
        %2041 = vmatpush1.bf16.msra.mxu0 %v2008
        %2042 = vmatprep.subr.bf16.mxu0 %v2011
        %2043 = vmatpush1.bf16.msra.mxu0 %v2010
        %2044 = vmatprep.subr.bf16.mxu0 %v2013
        %2045 = vmatpush1.bf16.msra.mxu0 %v2012
        %2046 = vmatprep.subr.bf16.mxu0 %v2015
        %2047 = vmatpush1.bf16.msra.mxu0 %v2014
        %2048 = vmatprep.subr.bf16.mxu0 %v2017
        %2049 = vmatpush1.bf16.msra.mxu0 %v2016
        %2050 = vmatprep.mubr.bf16.mxu0 %v1369
        %2051 = vmatmul.mubr.bf16.gmra.mrb[0].mxu0 %v1368
        %v2052 = vpop.f32.mrb[0].mxu0
        %v2053 = vadd.f32 0.0, %v2052
        %v2054 = vpop.f32.mrb[0].mxu0
        %v2055 = vadd.f32 0.0, %v2054
        %v2056 = vpop.f32.mrb[0].mxu0
        %v2057 = vadd.f32 0.0, %v2056
        %v2058 = vpop.f32.mrb[0].mxu0
        %v2059 = vadd.f32 0.0, %v2058
        %2060 = vmatprep.mubr.bf16.mxu0 %v1371
        %2061 = vmatmul.mubr.bf16.gmra.mrb[0].mxu0 %v1370
        %v2062 = vpop.f32.mrb[0].mxu0
        %v2063 = vadd.f32 0.0, %v2062
        %v2064 = vpop.f32.mrb[0].mxu0
        %v2065 = vadd.f32 0.0, %v2064
        %v2066 = vpop.f32.mrb[0].mxu0
        %v2067 = vadd.f32 0.0, %v2066
        %v2068 = vpop.f32.mrb[0].mxu0
        %v2069 = vadd.f32 0.0, %v2068
        %2070 = vdwg.mxu0
        %v2071 = vrcp.pop %v1948
        %v2072 = vrcp.pop %v1985
        %v2073 = vmul.f32 %v2053, %v2071
        %v2074 = vmul.f32 %v2055, %v2072
        %v2075 = vmul.f32 %v2057, %v2071
        %v2076 = vmul.f32 %v2059, %v2072
        %v2077 = vmul.f32 %v2063, %v2071
        %v2078 = vmul.f32 %v2065, %v2072
        %v2079 = vmul.f32 %v2067, %v2071
        %v2080 = vmul.f32 %v2069, %v2072
        %v2081 = vpack.c.bf16 %v2075, %v2073
        %v2082 = vpack.c.bf16 %v2076, %v2074
        %v2083 = vpack.c.bf16 %v2079, %v2077
        %v2084 = vpack.c.bf16 %v2080, %v2078
        %s2085 = smul.u32 %s1352, 4
        %s2086 = smul.addr %s2085, 8
        %s2087 = scalar_lea.vmem [#allocation3], %s2086
        %2088 = vst [vmem:[%s2087] sm:$0xff] %v2081
        %2089 = vst [vmem:[%s2087 + $0x8] sm:$0xff] %v2082
        %2090 = vst [vmem:[%s2087 + $0x10] sm:$0xff] %v2083
        %2091 = vst [vmem:[%s2087 + $0x18] sm:$0xff] %v2084
      $region57: #{attention_block_pallas.1} parent=51 // loop_footer
        %s1356 = sadd.s32 1, %s1352
      $region58: #{attention_block_pallas.1} parent=51 // loop_footer_branch
        %1351 = sbr.rel target = $region54
      $region59: #{attention_block_pallas.1} parent=51 // loop_exit
        _
      %v2092 = vld [vmem:[#allocation3] sm:$0xff]
      %v2093 = vld [vmem:[#allocation3 + $0x8] sm:$0xff]
      %v2094 = vld [vmem:[#allocation3 + $0x10] sm:$0xff]
      %v2095 = vld [vmem:[#allocation3 + $0x18] sm:$0xff]
      %v2096 = vld [vmem:[#allocation3 + $0x20] sm:$0xff]
      %v2097 = vld [vmem:[#allocation3 + $0x28] sm:$0xff]
      %v2098 = vld [vmem:[#allocation3 + $0x30] sm:$0xff]
      %v2099 = vld [vmem:[#allocation3 + $0x38] sm:$0xff]
      %v2100 = vld [vmem:[%s6] sm:$0xf]
      %v2101 = vld [vmem:[%s6 + $0x4] sm:$0xf]
      %v2102 = vld [vmem:[%s6 + $0x8] sm:$0xf]
      %v2103 = vld [vmem:[%s6 + $0xc] sm:$0xf]
      %v2104 = vld [vmem:[%s6 + $0x10] sm:$0xf]
      %v2105 = vld [vmem:[%s6 + $0x14] sm:$0xf]
      %v2106 = vld [vmem:[%s6 + $0x18] sm:$0xf]
      %v2107 = vld [vmem:[%s6 + $0x1c] sm:$0xf]
      %v2108 = vld [vmem:[%s7] sm:$0xff]
      %v2109 = vld [vmem:[%s7 + $0x8] sm:$0xff]
      %v2110 = vld [vmem:[%s7 + $0x10] sm:$0xff]
      %v2111 = vld [vmem:[%s7 + $0x18] sm:$0xff]
      %v2112 = vld [vmem:[%s7 + $0x20] sm:$0xff]
      %v2113 = vld [vmem:[%s7 + $0x28] sm:$0xff]
      %v2114 = vld [vmem:[%s7 + $0x30] sm:$0xff]
      %v2115 = vld [vmem:[%s7 + $0x38] sm:$0xff]
      %2117 = vset.pattern.permute.xlu0 0
      %2118 = vperm.xlu0 %2117, %v2108
      %v2119 = vpop.permute.xlu0 %2118
      %2122 = vset.pattern.permute.xlu0 0
      %2123 = vperm.xlu0 %2122, %v2109
      %v2124 = vpop.permute.xlu0 %2123
      %2127 = vset.pattern.permute.xlu0 0
      %2128 = vperm.xlu0 %2127, %v2110
      %v2129 = vpop.permute.xlu0 %2128
      %2132 = vset.pattern.permute.xlu0 0
      %2133 = vperm.xlu0 %2132, %v2111
      %v2134 = vpop.permute.xlu0 %2133
      %2137 = vset.pattern.permute.xlu0 0
      %2138 = vperm.xlu0 %2137, %v2112
      %v2139 = vpop.permute.xlu0 %2138
      %2142 = vset.pattern.permute.xlu0 0
      %2143 = vperm.xlu0 %2142, %v2113
      %v2144 = vpop.permute.xlu0 %2143
      %2147 = vset.pattern.permute.xlu0 0
      %2148 = vperm.xlu0 %2147, %v2114
      %v2149 = vpop.permute.xlu0 %2148
      %2152 = vset.pattern.permute.xlu0 0
      %2153 = vperm.xlu0 %2152, %v2115
      %v2154 = vpop.permute.xlu0 %2153
      %v2164 = vunpack.c.l.b16 %v2100
      %v2165 = vunpack.c.l.b16 %v2101
      %v2166 = vunpack.c.l.b16 %v2102
      %v2167 = vunpack.c.l.b16 %v2103
      %v2168 = vunpack.c.l.b16 %v2104
      %v2169 = vunpack.c.l.b16 %v2105
      %v2170 = vunpack.c.l.b16 %v2106
      %v2171 = vunpack.c.l.b16 %v2107
      %v2172 = vpack.c.b16 %v2165, %v2164
      %v2173 = vpack.c.b16 %v2167, %v2166
      %v2174 = vpack.c.b16 %v2169, %v2168
      %v2175 = vpack.c.b16 %v2171, %v2170
      %v2177 = vsel %vm355, %v2172, 0
      %v2180 = vsel %vm355, %v2173, 0
      %v2183 = vsel %vm355, %v2174, 0
      %v2186 = vsel %vm355, %v2175, 0
      %2188 = vmatprep.subr.bf16.mxu0 %v2093
      %2189 = vmatpush1.bf16.msra.mxu0 %v2092
      %2190 = vmatprep.subr.bf16.mxu0 %v2095
      %2191 = vmatpush1.bf16.msra.mxu0 %v2094
      %2192 = vmatprep.subr.bf16.mxu0 %v2097
      %2193 = vmatpush1.bf16.msra.mxu0 %v2096
      %2194 = vmatprep.subr.bf16.mxu0 %v2099
      %2195 = vmatpush1.bf16.msra.mxu0 %v2098
      %2196 = vmatprep.subr.bf16.mxu0 0
      %2197 = vmatpush1.bf16.msra.mxu0 0
      %2198 = vmatprep.subr.bf16.mxu0 0
      %2199 = vmatpush1.bf16.msra.mxu0 0
      %2200 = vmatprep.subr.bf16.mxu0 0
      %2201 = vmatpush1.bf16.msra.mxu0 0
      %2202 = vmatprep.subr.bf16.mxu0 0
      %2203 = vmatpush1.bf16.msra.mxu0 0
      %2204 = vmatprep.subr.bf16.mxu0 0
      %2205 = vmatpush1.bf16.msra.mxu0 0
      %2206 = vmatprep.subr.bf16.mxu0 0
      %2207 = vmatpush1.bf16.msra.mxu0 0
      %2208 = vmatprep.subr.bf16.mxu0 0
      %2209 = vmatpush1.bf16.msra.mxu0 0
      %2210 = vmatprep.subr.bf16.mxu0 0
      %2211 = vmatpush1.bf16.msra.mxu0 0
      %2212 = vmatprep.subr.bf16.mxu0 0
      %2213 = vmatpush1.bf16.msra.mxu0 0
      %2214 = vmatprep.subr.bf16.mxu0 0
      %2215 = vmatpush1.bf16.msra.mxu0 0
      %2216 = vmatprep.subr.bf16.mxu0 0
      %2217 = vmatpush1.bf16.msra.mxu0 0
      %2218 = vmatprep.subr.bf16.mxu0 0
      %2219 = vmatpush1.bf16.msra.mxu0 0
      %2220 = vmatprep.mubr.bf16.mxu0 0
      %2221 = vmatmul.mubr.bf16.gmra.mrb[0].mxu0 %v2177
      %v2222 = vpop.f32.mrb[0].mxu0
      %v2223 = vadd.f32 %v2119, %v2222
      %v2224 = vpop.f32.mrb[0].mxu0
      %v2225 = vadd.f32 %v2119, %v2224
      %v2226 = vpop.f32.mrb[0].mxu0
      %v2227 = vadd.f32 %v2124, %v2226
      %v2228 = vpop.f32.mrb[0].mxu0
      %v2229 = vadd.f32 %v2124, %v2228
      %2230 = vmatprep.mubr.bf16.mxu0 0
      %2231 = vmatmul.mubr.bf16.gmra.mrb[0].mxu0 %v2180
      %v2232 = vpop.f32.mrb[0].mxu0
      %v2233 = vadd.f32 %v2129, %v2232
      %v2234 = vpop.f32.mrb[0].mxu0
      %v2235 = vadd.f32 %v2129, %v2234
      %v2236 = vpop.f32.mrb[0].mxu0
      %v2237 = vadd.f32 %v2134, %v2236
      %v2238 = vpop.f32.mrb[0].mxu0
      %v2239 = vadd.f32 %v2134, %v2238
      %2240 = vmatprep.mubr.bf16.mxu0 0
      %2241 = vmatmul.mubr.bf16.gmra.mrb[0].mxu0 %v2183
      %v2242 = vpop.f32.mrb[0].mxu0
      %v2243 = vadd.f32 %v2139, %v2242
      %v2244 = vpop.f32.mrb[0].mxu0
      %v2245 = vadd.f32 %v2139, %v2244
      %v2246 = vpop.f32.mrb[0].mxu0
      %v2247 = vadd.f32 %v2144, %v2246
      %v2248 = vpop.f32.mrb[0].mxu0
      %v2249 = vadd.f32 %v2144, %v2248
      %2250 = vmatprep.mubr.bf16.mxu0 0
      %2251 = vmatmul.mubr.bf16.gmra.mrb[0].mxu0 %v2186
      %v2252 = vpop.f32.mrb[0].mxu0
      %v2253 = vadd.f32 %v2149, %v2252
      %v2254 = vpop.f32.mrb[0].mxu0
      %v2255 = vadd.f32 %v2149, %v2254
      %v2256 = vpop.f32.mrb[0].mxu0
      %v2257 = vadd.f32 %v2154, %v2256
      %v2258 = vpop.f32.mrb[0].mxu0
      %v2259 = vadd.f32 %v2154, %v2258
      %2260 = vdwg.mxu0
      %v2261 = vadd.f32 %v307, %v2223
      %v2262 = vadd.f32 %v308, %v2225
      %v2263 = vadd.f32 %v309, %v2227
      %v2264 = vadd.f32 %v310, %v2229
      %v2265 = vadd.f32 %v311, %v2233
      %v2266 = vadd.f32 %v312, %v2235
      %v2267 = vadd.f32 %v313, %v2237
      %v2268 = vadd.f32 %v314, %v2239
      %v2269 = vadd.f32 %v315, %v2243
      %v2270 = vadd.f32 %v316, %v2245
      %v2271 = vadd.f32 %v317, %v2247
      %v2272 = vadd.f32 %v318, %v2249
      %v2273 = vadd.f32 %v319, %v2253
      %v2274 = vadd.f32 %v320, %v2255
      %v2275 = vadd.f32 %v321, %v2257
      %v2276 = vadd.f32 %v322, %v2259
      %2277 = vst [vmem:[%s305] sm:$0xff] %v2261
      %2278 = vst [vmem:[%s305 + $0x8] sm:$0xff] %v2262
      %2279 = vst [vmem:[%s305 + $0x10] sm:$0xff] %v2263
      %2280 = vst [vmem:[%s305 + $0x18] sm:$0xff] %v2264
      %2281 = vst [vmem:[%s305 + $0x20] sm:$0xff] %v2265
      %2282 = vst [vmem:[%s305 + $0x28] sm:$0xff] %v2266
      %2283 = vst [vmem:[%s305 + $0x30] sm:$0xff] %v2267
      %2284 = vst [vmem:[%s305 + $0x38] sm:$0xff] %v2268
      %2285 = vst [vmem:[%s305 + $0x40] sm:$0xff] %v2269
      %2286 = vst [vmem:[%s305 + $0x48] sm:$0xff] %v2270
      %2287 = vst [vmem:[%s305 + $0x50] sm:$0xff] %v2271
      %2288 = vst [vmem:[%s305 + $0x58] sm:$0xff] %v2272
      %2289 = vst [vmem:[%s305 + $0x60] sm:$0xff] %v2273
      %2290 = vst [vmem:[%s305 + $0x68] sm:$0xff] %v2274
      %2291 = vst [vmem:[%s305 + $0x70] sm:$0xff] %v2275
      %2292 = vst [vmem:[%s305 + $0x78] sm:$0xff] %v2276
      %p2293 = scmp.lt.s32.totalorder %s19, 1
      %s2294 = scalar_select %p2293, %s19, 1
      %s2295 = smul.addr %s2294, 16
      %s2296 = smul.addr %s2295, 8
      %s2297 = scalar_lea.vmem %s8, %s2296
      // Predicated region
      $region60: #{attention_block_pallas.1} parent=51 // pred_check
        %p2298 = pneg %p210
      $region61: #{attention_block_pallas.1} parent=51 // pred_check_branch
        %2300 = sbr.rel (%p2298) target = $region63
      $region62: #{attention_block_pallas.1} parent=51 // pred_region
        _
      $region63: #{attention_block_pallas.1} parent=51 // pred_fallthru
        _
    $region52: #{attention_block_pallas.1} parent=5 // pred_fallthru
      _
    %p2301 = scmp.le.s32.totalorder 2, %s14
    // Predicated region
    $region64: #{attention_block_pallas.1} parent=5 // pred_check
      %p2302 = pneg %p2301
    $region65: #{attention_block_pallas.1} parent=5 // pred_check_branch
      %2304 = sbr.rel (%p2302) target = $region67
    $region66: #{attention_block_pallas.1} parent=5 // pred_region
      %s2305 = ssub.s32 %s14, 2
      // Predicated region
      $region68: #{attention_block_pallas.1} parent=66 // pred_check
        %p2306 = pneg %p216
      $region69: #{attention_block_pallas.1} parent=66 // pred_check_branch
        %2308 = sbr.rel (%p2306) target = $region71
      $region70: #{attention_block_pallas.1} parent=66 // pred_region
        %p2309 = scmp.lt.s32.totalorder %s20, 1
        %s2310 = scalar_select %p2309, %s20, 1
        %s2311 = smul.addr %s2310, 16
        %s2312 = smul.addr %s2311, 8
        %s2313 = scalar_lea.vmem %s8, %s2312
      $region71: #{attention_block_pallas.1} parent=66 // pred_fallthru
        _
    $region67: #{attention_block_pallas.1} parent=5 // pred_fallthru
      _
  $region6: #{attention_block_pallas.1} parent=0 // loop_footer
    %s18 = sadd.s32 1, %s14
  $region7: #{attention_block_pallas.1} parent=0 // loop_footer_branch
    %13 = sbr.rel target = $region3
  $region8: #{attention_block_pallas.1} parent=0 // loop_exit
    _

</llo_original>
